<compile_context>
chip_gen: v5e
topology: v5e:2x2
jax: 0.10.0
libtpu: 0.0.40
codegen_flags: <defaults>
</compile_context>

<pallas_src>
import jax
import jax.numpy as jnp
from jax.experimental import pallas as pl
from jax.experimental.pallas import tpu as pltpu


def down_kernel(x_ref, w1_ref, b1_ref, g1_ref, bt1_ref,
                w2_ref, b2_ref, g2_ref, bt2_ref,
                out_ref, pad1_ref, pad2_ref):
    N, H, W, Cin = x_ref.shape
    Ho, Wo = H // 2, W // 2
    Cout = out_ref.shape[-1]
    rows = N * Ho * Wo
    eps = 1e-5

    # ---- MaxPool2d(kernel=2, stride=2): four stride-2 loads + elementwise max
    x00 = x_ref[:, pl.ds(0, Ho, 2), pl.ds(0, Wo, 2), :]
    x01 = x_ref[:, pl.ds(0, Ho, 2), pl.ds(1, Wo, 2), :]
    x10 = x_ref[:, pl.ds(1, Ho, 2), pl.ds(0, Wo, 2), :]
    x11 = x_ref[:, pl.ds(1, Ho, 2), pl.ds(1, Wo, 2), :]
    pooled = jnp.maximum(jnp.maximum(x00, x01), jnp.maximum(x10, x11))

    def conv_bn_relu(inp_nhwc, pad_ref, w_ref, b_ref, g_ref, bt_ref, cin):
        # Zero only the 1-pixel halo ring; the interior is overwritten below.
        zrow = jnp.zeros((N, 1, Wo + 2, cin), jnp.float32)
        zcol = jnp.zeros((N, Ho + 2, 1, cin), jnp.float32)
        pad_ref[:, 0:1, :, :] = zrow
        pad_ref[:, Ho + 1:Ho + 2, :, :] = zrow
        pad_ref[:, :, 0:1, :] = zcol
        pad_ref[:, :, Wo + 1:Wo + 2, :] = zcol
        pad_ref[:, 1:Ho + 1, 1:Wo + 1, :] = inp_nhwc

        # im2col: concatenate the 9 shifted taps on the lane axis and do ONE
        # (rows, 9*cin) x (9*cin, Cout) matmul at default MXU precision.
        taps = []
        for dy in range(3):
            for dx in range(3):
                taps.append(
                    pad_ref[:, dy:dy + Ho, dx:dx + Wo, :].reshape(rows, cin))
        patches = jnp.concatenate(taps, axis=-1)                 # (rows, 9*cin)
        acc = jnp.dot(patches, w_ref[...],
                      preferred_element_type=jnp.float32)        # (rows, Cout)

        # conv bias + BatchNorm2d (training-mode batch stats, biased variance,
        # eps=1e-5) + ReLU folded into one affine pass.
        mean_acc = jnp.mean(acc, axis=0, keepdims=True)          # (1, Cout)
        var = jnp.mean((acc - mean_acc) ** 2, axis=0, keepdims=True)
        mean_y = mean_acc + b_ref[...]                           # mean of conv+bias
        scale = g_ref[...] * jax.lax.rsqrt(var + eps)            # (1, Cout)
        shift = bt_ref[...] + (b_ref[...] - mean_y) * scale      # (1, Cout)
        return jnp.maximum(acc * scale + shift, 0.0)             # (rows, Cout)

    h1 = conv_bn_relu(pooled, pad1_ref, w1_ref, b1_ref, g1_ref, bt1_ref, Cin)
    h2 = conv_bn_relu(h1.reshape(N, Ho, Wo, Cout), pad2_ref,
                      w2_ref, b2_ref, g2_ref, bt2_ref, Cout)

    out_ref[...] = h2.reshape(N, Ho, Wo, Cout)


@jax.jit
def down_forward(x_nchw, w1, b1, g1, bt1, w2, b2, g2, bt2):
    """x_nchw: (N, Cin, H, W) f32.  Returns (N, Cout, H//2, W//2) f32 (NCHW)."""
    N, Cin, H, W = x_nchw.shape
    Cout = w1.shape[0]
    Ho, Wo = H // 2, W // 2

    x_nhwc = jnp.transpose(x_nchw, (0, 2, 3, 1)).astype(jnp.float32)
    # OIHW -> HWIO -> im2col weight matrix with row order (dy, dx, ci).
    w1_mat = jnp.transpose(w1, (2, 3, 1, 0)).reshape(9 * Cin, Cout)
    w2_mat = jnp.transpose(w2, (2, 3, 1, 0)).reshape(9 * Cout, Cout)

    out_nhwc = pl.pallas_call(
        down_kernel,
        out_shape=jax.ShapeDtypeStruct((N, Ho, Wo, Cout), jnp.float32),
        in_specs=[pl.BlockSpec(memory_space=pltpu.MemorySpace.VMEM)] * 9,
        out_specs=pl.BlockSpec(memory_space=pltpu.MemorySpace.VMEM),
        scratch_shapes=[
            # At larger N/H/W these two should share one max(Cin,Cout)-wide
            # buffer (or sequential pl.run_scoped scopes) to halve scratch VMEM.
            pltpu.VMEM((N, Ho + 2, Wo + 2, Cin), jnp.float32),   # conv1 padded in
            pltpu.VMEM((N, Ho + 2, Wo + 2, Cout), jnp.float32),  # conv2 padded in
        ],
    )(x_nhwc, w1_mat,
      b1.reshape(1, Cout), g1.reshape(1, Cout), bt1.reshape(1, Cout),
      w2_mat,
      b2.reshape(1, Cout), g2.reshape(1, Cout), bt2.reshape(1, Cout))

    return jnp.transpose(out_nhwc, (0, 3, 1, 2))   # back to NCHW


def reference_forward(x, w1, b1, g1, bt1, w2, b2, g2, bt2):
    """Plain-JAX reference mirroring PyTorch semantics (training-mode BN)."""
    N, C, H, W = x.shape
    xp = x.reshape(N, C, H // 2, 2, W // 2, 2).max(axis=(3, 5))

    def conv_bn_relu(h, w, b, g, bt):
        y = jax.lax.conv_general_dilated(
            h, w, window_strides=(1, 1), padding=((1, 1), (1, 1)),
            dimension_numbers=("NCHW", "OIHW", "NCHW"))
        y = y + b[None, :, None, None]
        mean = y.mean(axis=(0, 2, 3), keepdims=True)
        var = ((y - mean) ** 2).mean(axis=(0, 2, 3), keepdims=True)
        y = (g[None, :, None, None] * (y - mean) * jax.lax.rsqrt(var + 1e-5)
             + bt[None, :, None, None])
        return jnp.maximum(y, 0.0)

    h = conv_bn_relu(xp, w1, b1, g1, bt1)
    h = conv_bn_relu(h, w2, b2, g2, bt2)
    return h


if __name__ == "__main__":
    in_ch, out_ch = 4, 8
    N, H, W = 2, 16, 16

    key = jax.random.PRNGKey(0)
    ks = jax.random.split(key, 9)
    x = jax.random.normal(ks[0], (N, in_ch, H, W), jnp.float32)

    # Deterministic synthetic parameters (PyTorch Conv2d weight layout OIHW).
    w1 = 0.2 * jax.random.normal(ks[1], (out_ch, in_ch, 3, 3), jnp.float32)
    b1 = 0.1 * jax.random.normal(ks[2], (out_ch,), jnp.float32)
    g1 = 1.0 + 0.1 * jax.random.normal(ks[3], (out_ch,), jnp.float32)
    bt1 = 0.1 * jax.random.normal(ks[4], (out_ch,), jnp.float32)
    w2 = 0.2 * jax.random.normal(ks[5], (out_ch, out_ch, 3, 3), jnp.float32)
    b2 = 0.1 * jax.random.normal(ks[6], (out_ch,), jnp.float32)
    g2 = 1.0 + 0.1 * jax.random.normal(ks[7], (out_ch,), jnp.float32)
    bt2 = 0.1 * jax.random.normal(ks[8], (out_ch,), jnp.float32)

    out = down_forward(x, w1, b1, g1, bt1, w2, b2, g2, bt2)
    out = jax.block_until_ready(out)

    ref = reference_forward(x, w1, b1, g1, bt1, w2, b2, g2, bt2)
    ref = jax.block_until_ready(ref)

    assert out.shape == (N, out_ch, H // 2, W // 2), out.shape
    # Both kernel and reference now use the default (bf16-pass, f32-accumulate)
    # MXU precision; 5e-3 absorbs rounding-order differences while still
    # catching any real layout/indexing bug (which would be O(1)).
    err = float(jnp.max(jnp.abs(out - ref)))
    assert err < 5e-3, f"max abs err {err}"

    print("KERNEL_OK")
</pallas_src>

<mosaic_0001>
module attributes {stable_mosaic.version = 11 : i64} {
  func.func @down_kernel(%arg0: memref<2x16x16x4xf32, #tpu.memory_space<vmem>>, %arg1: memref<36x8xf32, #tpu.memory_space<vmem>>, %arg2: memref<1x8xf32, #tpu.memory_space<vmem>>, %arg3: memref<1x8xf32, #tpu.memory_space<vmem>>, %arg4: memref<1x8xf32, #tpu.memory_space<vmem>>, %arg5: memref<72x8xf32, #tpu.memory_space<vmem>>, %arg6: memref<1x8xf32, #tpu.memory_space<vmem>>, %arg7: memref<1x8xf32, #tpu.memory_space<vmem>>, %arg8: memref<1x8xf32, #tpu.memory_space<vmem>>, %arg9: memref<2x8x8x8xf32, #tpu.memory_space<vmem>>, %arg10: memref<2x10x10x4xf32, #tpu.memory_space<vmem>>, %arg11: memref<2x10x10x8xf32, #tpu.memory_space<vmem>>) attributes {dimension_semantics = [], scalar_prefetch = 0 : i64, scratch_operands = 2 : i64, tpu.core_type = #tpu.core_type<tc>} {
    %c0 = arith.constant 0 : index
    %c0_0 = arith.constant 0 : index
    %c0_1 = arith.constant 0 : index
    %c0_2 = arith.constant 0 : index
    %0 = tpu.strided_load %arg0[%c0, %c0_0, %c0_1, %c0_2] {strides = array<i32: 1, 2, 2, 1>} : memref<2x16x16x4xf32, #tpu.memory_space<vmem>>, vector<2x8x8x4xf32>
    %c0_3 = arith.constant 0 : index
    %c0_4 = arith.constant 0 : index
    %c1 = arith.constant 1 : index
    %c0_5 = arith.constant 0 : index
    %1 = tpu.strided_load %arg0[%c0_3, %c0_4, %c1, %c0_5] {strides = array<i32: 1, 2, 2, 1>} : memref<2x16x16x4xf32, #tpu.memory_space<vmem>>, vector<2x8x8x4xf32>
    %c0_6 = arith.constant 0 : index
    %c1_7 = arith.constant 1 : index
    %c0_8 = arith.constant 0 : index
    %c0_9 = arith.constant 0 : index
    %2 = tpu.strided_load %arg0[%c0_6, %c1_7, %c0_8, %c0_9] {strides = array<i32: 1, 2, 2, 1>} : memref<2x16x16x4xf32, #tpu.memory_space<vmem>>, vector<2x8x8x4xf32>
    %c0_10 = arith.constant 0 : index
    %c1_11 = arith.constant 1 : index
    %c1_12 = arith.constant 1 : index
    %c0_13 = arith.constant 0 : index
    %3 = tpu.strided_load %arg0[%c0_10, %c1_11, %c1_12, %c0_13] {strides = array<i32: 1, 2, 2, 1>} : memref<2x16x16x4xf32, #tpu.memory_space<vmem>>, vector<2x8x8x4xf32>
    %4 = arith.maximumf %0, %1 : vector<2x8x8x4xf32>
    %5 = arith.maximumf %2, %3 : vector<2x8x8x4xf32>
    %6 = arith.maximumf %4, %5 : vector<2x8x8x4xf32>
    %cst = arith.constant 0.000000e+00 : f32
    %7 = vector.broadcast %cst : f32 to vector<2x1x10x4xf32>
    %cst_14 = arith.constant 0.000000e+00 : f32
    %8 = vector.broadcast %cst_14 : f32 to vector<2x10x1x4xf32>
    %c0_15 = arith.constant 0 : index
    %c0_16 = arith.constant 0 : index
    %c0_17 = arith.constant 0 : index
    %c0_18 = arith.constant 0 : index
    %9 = vector.load %arg10[%c0_15, %c0_16, %c0_17, %c0_18] : memref<2x10x10x4xf32, #tpu.memory_space<vmem>>, vector<2x1x10x4xf32>
    tpu.vector_store %arg10[%c0_15, %c0_16, %c0_17, %c0_18], %7 {strides = array<i32>} : memref<2x10x10x4xf32, #tpu.memory_space<vmem>>, vector<2x1x10x4xf32>,
    %c0_19 = arith.constant 0 : index
    %c9 = arith.constant 9 : index
    %c0_20 = arith.constant 0 : index
    %c0_21 = arith.constant 0 : index
    %10 = vector.load %arg10[%c0_19, %c9, %c0_20, %c0_21] : memref<2x10x10x4xf32, #tpu.memory_space<vmem>>, vector<2x1x10x4xf32>
    tpu.vector_store %arg10[%c0_19, %c9, %c0_20, %c0_21], %7 {strides = array<i32>} : memref<2x10x10x4xf32, #tpu.memory_space<vmem>>, vector<2x1x10x4xf32>,
    %c0_22 = arith.constant 0 : index
    %c0_23 = arith.constant 0 : index
    %c0_24 = arith.constant 0 : index
    %c0_25 = arith.constant 0 : index
    %11 = vector.load %arg10[%c0_22, %c0_23, %c0_24, %c0_25] : memref<2x10x10x4xf32, #tpu.memory_space<vmem>>, vector<2x10x1x4xf32>
    tpu.vector_store %arg10[%c0_22, %c0_23, %c0_24, %c0_25], %8 {strides = array<i32>} : memref<2x10x10x4xf32, #tpu.memory_space<vmem>>, vector<2x10x1x4xf32>,
    %c0_26 = arith.constant 0 : index
    %c0_27 = arith.constant 0 : index
    %c9_28 = arith.constant 9 : index
    %c0_29 = arith.constant 0 : index
    %12 = vector.load %arg10[%c0_26, %c0_27, %c9_28, %c0_29] : memref<2x10x10x4xf32, #tpu.memory_space<vmem>>, vector<2x10x1x4xf32>
    tpu.vector_store %arg10[%c0_26, %c0_27, %c9_28, %c0_29], %8 {strides = array<i32>} : memref<2x10x10x4xf32, #tpu.memory_space<vmem>>, vector<2x10x1x4xf32>,
    %c0_30 = arith.constant 0 : index
    %c1_31 = arith.constant 1 : index
    %c1_32 = arith.constant 1 : index
    %c0_33 = arith.constant 0 : index
    %13 = vector.load %arg10[%c0_30, %c1_31, %c1_32, %c0_33] : memref<2x10x10x4xf32, #tpu.memory_space<vmem>>, vector<2x8x8x4xf32>
    tpu.vector_store %arg10[%c0_30, %c1_31, %c1_32, %c0_33], %6 {strides = array<i32>} : memref<2x10x10x4xf32, #tpu.memory_space<vmem>>, vector<2x8x8x4xf32>,
    %c0_34 = arith.constant 0 : index
    %c0_35 = arith.constant 0 : index
    %c0_36 = arith.constant 0 : index
    %c0_37 = arith.constant 0 : index
    %14 = vector.load %arg10[%c0_34, %c0_35, %c0_36, %c0_37] : memref<2x10x10x4xf32, #tpu.memory_space<vmem>>, vector<2x8x8x4xf32>
    %15 = vector.shape_cast %14 : vector<2x8x8x4xf32> to vector<128x4xf32>
    %c0_38 = arith.constant 0 : index
    %c0_39 = arith.constant 0 : index
    %c1_40 = arith.constant 1 : index
    %c0_41 = arith.constant 0 : index
    %16 = vector.load %arg10[%c0_38, %c0_39, %c1_40, %c0_41] : memref<2x10x10x4xf32, #tpu.memory_space<vmem>>, vector<2x8x8x4xf32>
    %17 = vector.shape_cast %16 : vector<2x8x8x4xf32> to vector<128x4xf32>
    %c0_42 = arith.constant 0 : index
    %c0_43 = arith.constant 0 : index
    %c2 = arith.constant 2 : index
    %c0_44 = arith.constant 0 : index
    %18 = vector.load %arg10[%c0_42, %c0_43, %c2, %c0_44] : memref<2x10x10x4xf32, #tpu.memory_space<vmem>>, vector<2x8x8x4xf32>
    %19 = vector.shape_cast %18 : vector<2x8x8x4xf32> to vector<128x4xf32>
    %c0_45 = arith.constant 0 : index
    %c1_46 = arith.constant 1 : index
    %c0_47 = arith.constant 0 : index
    %c0_48 = arith.constant 0 : index
    %20 = vector.load %arg10[%c0_45, %c1_46, %c0_47, %c0_48] : memref<2x10x10x4xf32, #tpu.memory_space<vmem>>, vector<2x8x8x4xf32>
    %21 = vector.shape_cast %20 : vector<2x8x8x4xf32> to vector<128x4xf32>
    %c0_49 = arith.constant 0 : index
    %c1_50 = arith.constant 1 : index
    %c1_51 = arith.constant 1 : index
    %c0_52 = arith.constant 0 : index
    %22 = vector.load %arg10[%c0_49, %c1_50, %c1_51, %c0_52] : memref<2x10x10x4xf32, #tpu.memory_space<vmem>>, vector<2x8x8x4xf32>
    %23 = vector.shape_cast %22 : vector<2x8x8x4xf32> to vector<128x4xf32>
    %c0_53 = arith.constant 0 : index
    %c1_54 = arith.constant 1 : index
    %c2_55 = arith.constant 2 : index
    %c0_56 = arith.constant 0 : index
    %24 = vector.load %arg10[%c0_53, %c1_54, %c2_55, %c0_56] : memref<2x10x10x4xf32, #tpu.memory_space<vmem>>, vector<2x8x8x4xf32>
    %25 = vector.shape_cast %24 : vector<2x8x8x4xf32> to vector<128x4xf32>
    %c0_57 = arith.constant 0 : index
    %c2_58 = arith.constant 2 : index
    %c0_59 = arith.constant 0 : index
    %c0_60 = arith.constant 0 : index
    %26 = vector.load %arg10[%c0_57, %c2_58, %c0_59, %c0_60] : memref<2x10x10x4xf32, #tpu.memory_space<vmem>>, vector<2x8x8x4xf32>
    %27 = vector.shape_cast %26 : vector<2x8x8x4xf32> to vector<128x4xf32>
    %c0_61 = arith.constant 0 : index
    %c2_62 = arith.constant 2 : index
    %c1_63 = arith.constant 1 : index
    %c0_64 = arith.constant 0 : index
    %28 = vector.load %arg10[%c0_61, %c2_62, %c1_63, %c0_64] : memref<2x10x10x4xf32, #tpu.memory_space<vmem>>, vector<2x8x8x4xf32>
    %29 = vector.shape_cast %28 : vector<2x8x8x4xf32> to vector<128x4xf32>
    %c0_65 = arith.constant 0 : index
    %c2_66 = arith.constant 2 : index
    %c2_67 = arith.constant 2 : index
    %c0_68 = arith.constant 0 : index
    %30 = vector.load %arg10[%c0_65, %c2_66, %c2_67, %c0_68] : memref<2x10x10x4xf32, #tpu.memory_space<vmem>>, vector<2x8x8x4xf32>
    %31 = vector.shape_cast %30 : vector<2x8x8x4xf32> to vector<128x4xf32>
    %32 = tpu.concatenate %15, %17, %19, %21, %23, %25, %27, %29, %31 in 1 : vector<128x4xf32>, vector<128x4xf32>, vector<128x4xf32>, vector<128x4xf32>, vector<128x4xf32>, vector<128x4xf32>, vector<128x4xf32>, vector<128x4xf32>, vector<128x4xf32> -> vector<128x36xf32>
    %c0_69 = arith.constant 0 : index
    %c0_70 = arith.constant 0 : index
    %33 = vector.load %arg1[%c0_69, %c0_70] : memref<36x8xf32, #tpu.memory_space<vmem>>, vector<36x8xf32>
    %cst_71 = arith.constant dense<0.000000e+00> : vector<128x8xf32>
    %34 = tpu.matmul %32, %33, %cst_71 {dimension_numbers = #tpu.dot_dimension_numbers<[1], [0], [0], [1], [0, 0, 1, 1], [], []>} : vector<128x36xf32>, vector<36x8xf32>, vector<128x8xf32> -> vector<128x8xf32>
    %cst_72 = arith.constant dense<0.000000e+00> : vector<8xf32>
    %35 = vector.multi_reduction <add>, %34, %cst_72 [0] : vector<128x8xf32> to vector<8xf32>
    %36 = vector.shape_cast %35 : vector<8xf32> to vector<1x8xf32>
    %cst_73 = arith.constant 1.280000e+02 : f32
    %37 = vector.broadcast %cst_73 : f32 to vector<1x8xf32>
    %38 = arith.divf %36, %37 : vector<1x8xf32>
    %39 = vector.broadcast %38 : vector<1x8xf32> to vector<128x8xf32>
    %40 = arith.subf %34, %39 : vector<128x8xf32>
    %41 = arith.mulf %40, %40 : vector<128x8xf32>
    %cst_74 = arith.constant dense<0.000000e+00> : vector<8xf32>
    %42 = vector.multi_reduction <add>, %41, %cst_74 [0] : vector<128x8xf32> to vector<8xf32>
    %43 = vector.shape_cast %42 : vector<8xf32> to vector<1x8xf32>
    %cst_75 = arith.constant 1.280000e+02 : f32
    %44 = vector.broadcast %cst_75 : f32 to vector<1x8xf32>
    %45 = arith.divf %43, %44 : vector<1x8xf32>
    %c0_76 = arith.constant 0 : index
    %c0_77 = arith.constant 0 : index
    %46 = vector.load %arg2[%c0_76, %c0_77] : memref<1x8xf32, #tpu.memory_space<vmem>>, vector<1x8xf32>
    %47 = arith.addf %38, %46 : vector<1x8xf32>
    %c0_78 = arith.constant 0 : index
    %c0_79 = arith.constant 0 : index
    %48 = vector.load %arg3[%c0_78, %c0_79] : memref<1x8xf32, #tpu.memory_space<vmem>>, vector<1x8xf32>
    %cst_80 = arith.constant 9.99999974E-6 : f32
    %49 = vector.broadcast %cst_80 : f32 to vector<1x8xf32>
    %50 = arith.addf %45, %49 : vector<1x8xf32>
    %51 = math.rsqrt %50 : vector<1x8xf32>
    %52 = arith.mulf %48, %51 : vector<1x8xf32>
    %c0_81 = arith.constant 0 : index
    %c0_82 = arith.constant 0 : index
    %53 = vector.load %arg4[%c0_81, %c0_82] : memref<1x8xf32, #tpu.memory_space<vmem>>, vector<1x8xf32>
    %c0_83 = arith.constant 0 : index
    %c0_84 = arith.constant 0 : index
    %54 = vector.load %arg2[%c0_83, %c0_84] : memref<1x8xf32, #tpu.memory_space<vmem>>, vector<1x8xf32>
    %55 = arith.subf %54, %47 : vector<1x8xf32>
    %56 = arith.mulf %55, %52 : vector<1x8xf32>
    %57 = arith.addf %53, %56 : vector<1x8xf32>
    %58 = vector.broadcast %52 : vector<1x8xf32> to vector<128x8xf32>
    %59 = arith.mulf %34, %58 : vector<128x8xf32>
    %60 = vector.broadcast %57 : vector<1x8xf32> to vector<128x8xf32>
    %61 = arith.addf %59, %60 : vector<128x8xf32>
    %cst_85 = arith.constant 0.000000e+00 : f32
    %62 = vector.broadcast %cst_85 : f32 to vector<128x8xf32>
    %63 = arith.maximumf %61, %62 : vector<128x8xf32>
    %64 = vector.shape_cast %63 : vector<128x8xf32> to vector<2x8x8x8xf32>
    %cst_86 = arith.constant 0.000000e+00 : f32
    %65 = vector.broadcast %cst_86 : f32 to vector<2x1x10x8xf32>
    %cst_87 = arith.constant 0.000000e+00 : f32
    %66 = vector.broadcast %cst_87 : f32 to vector<2x10x1x8xf32>
    %c0_88 = arith.constant 0 : index
    %c0_89 = arith.constant 0 : index
    %c0_90 = arith.constant 0 : index
    %c0_91 = arith.constant 0 : index
    %67 = vector.load %arg11[%c0_88, %c0_89, %c0_90, %c0_91] : memref<2x10x10x8xf32, #tpu.memory_space<vmem>>, vector<2x1x10x8xf32>
    tpu.vector_store %arg11[%c0_88, %c0_89, %c0_90, %c0_91], %65 {strides = array<i32>} : memref<2x10x10x8xf32, #tpu.memory_space<vmem>>, vector<2x1x10x8xf32>,
    %c0_92 = arith.constant 0 : index
    %c9_93 = arith.constant 9 : index
    %c0_94 = arith.constant 0 : index
    %c0_95 = arith.constant 0 : index
    %68 = vector.load %arg11[%c0_92, %c9_93, %c0_94, %c0_95] : memref<2x10x10x8xf32, #tpu.memory_space<vmem>>, vector<2x1x10x8xf32>
    tpu.vector_store %arg11[%c0_92, %c9_93, %c0_94, %c0_95], %65 {strides = array<i32>} : memref<2x10x10x8xf32, #tpu.memory_space<vmem>>, vector<2x1x10x8xf32>,
    %c0_96 = arith.constant 0 : index
    %c0_97 = arith.constant 0 : index
    %c0_98 = arith.constant 0 : index
    %c0_99 = arith.constant 0 : index
    %69 = vector.load %arg11[%c0_96, %c0_97, %c0_98, %c0_99] : memref<2x10x10x8xf32, #tpu.memory_space<vmem>>, vector<2x10x1x8xf32>
    tpu.vector_store %arg11[%c0_96, %c0_97, %c0_98, %c0_99], %66 {strides = array<i32>} : memref<2x10x10x8xf32, #tpu.memory_space<vmem>>, vector<2x10x1x8xf32>,
    %c0_100 = arith.constant 0 : index
    %c0_101 = arith.constant 0 : index
    %c9_102 = arith.constant 9 : index
    %c0_103 = arith.constant 0 : index
    %70 = vector.load %arg11[%c0_100, %c0_101, %c9_102, %c0_103] : memref<2x10x10x8xf32, #tpu.memory_space<vmem>>, vector<2x10x1x8xf32>
    tpu.vector_store %arg11[%c0_100, %c0_101, %c9_102, %c0_103], %66 {strides = array<i32>} : memref<2x10x10x8xf32, #tpu.memory_space<vmem>>, vector<2x10x1x8xf32>,
    %c0_104 = arith.constant 0 : index
    %c1_105 = arith.constant 1 : index
    %c1_106 = arith.constant 1 : index
    %c0_107 = arith.constant 0 : index
    %71 = vector.load %arg11[%c0_104, %c1_105, %c1_106, %c0_107] : memref<2x10x10x8xf32, #tpu.memory_space<vmem>>, vector<2x8x8x8xf32>
    tpu.vector_store %arg11[%c0_104, %c1_105, %c1_106, %c0_107], %64 {strides = array<i32>} : memref<2x10x10x8xf32, #tpu.memory_space<vmem>>, vector<2x8x8x8xf32>,
    %c0_108 = arith.constant 0 : index
    %c0_109 = arith.constant 0 : index
    %c0_110 = arith.constant 0 : index
    %c0_111 = arith.constant 0 : index
    %72 = vector.load %arg11[%c0_108, %c0_109, %c0_110, %c0_111] : memref<2x10x10x8xf32, #tpu.memory_space<vmem>>, vector<2x8x8x8xf32>
    %73 = vector.shape_cast %72 : vector<2x8x8x8xf32> to vector<128x8xf32>
    %c0_112 = arith.constant 0 : index
    %c0_113 = arith.constant 0 : index
    %c1_114 = arith.constant 1 : index
    %c0_115 = arith.constant 0 : index
    %74 = vector.load %arg11[%c0_112, %c0_113, %c1_114, %c0_115] : memref<2x10x10x8xf32, #tpu.memory_space<vmem>>, vector<2x8x8x8xf32>
    %75 = vector.shape_cast %74 : vector<2x8x8x8xf32> to vector<128x8xf32>
    %c0_116 = arith.constant 0 : index
    %c0_117 = arith.constant 0 : index
    %c2_118 = arith.constant 2 : index
    %c0_119 = arith.constant 0 : index
    %76 = vector.load %arg11[%c0_116, %c0_117, %c2_118, %c0_119] : memref<2x10x10x8xf32, #tpu.memory_space<vmem>>, vector<2x8x8x8xf32>
    %77 = vector.shape_cast %76 : vector<2x8x8x8xf32> to vector<128x8xf32>
    %c0_120 = arith.constant 0 : index
    %c1_121 = arith.constant 1 : index
    %c0_122 = arith.constant 0 : index
    %c0_123 = arith.constant 0 : index
    %78 = vector.load %arg11[%c0_120, %c1_121, %c0_122, %c0_123] : memref<2x10x10x8xf32, #tpu.memory_space<vmem>>, vector<2x8x8x8xf32>
    %79 = vector.shape_cast %78 : vector<2x8x8x8xf32> to vector<128x8xf32>
    %c0_124 = arith.constant 0 : index
    %c1_125 = arith.constant 1 : index
    %c1_126 = arith.constant 1 : index
    %c0_127 = arith.constant 0 : index
    %80 = vector.load %arg11[%c0_124, %c1_125, %c1_126, %c0_127] : memref<2x10x10x8xf32, #tpu.memory_space<vmem>>, vector<2x8x8x8xf32>
    %81 = vector.shape_cast %80 : vector<2x8x8x8xf32> to vector<128x8xf32>
    %c0_128 = arith.constant 0 : index
    %c1_129 = arith.constant 1 : index
    %c2_130 = arith.constant 2 : index
    %c0_131 = arith.constant 0 : index
    %82 = vector.load %arg11[%c0_128, %c1_129, %c2_130, %c0_131] : memref<2x10x10x8xf32, #tpu.memory_space<vmem>>, vector<2x8x8x8xf32>
    %83 = vector.shape_cast %82 : vector<2x8x8x8xf32> to vector<128x8xf32>
    %c0_132 = arith.constant 0 : index
    %c2_133 = arith.constant 2 : index
    %c0_134 = arith.constant 0 : index
    %c0_135 = arith.constant 0 : index
    %84 = vector.load %arg11[%c0_132, %c2_133, %c0_134, %c0_135] : memref<2x10x10x8xf32, #tpu.memory_space<vmem>>, vector<2x8x8x8xf32>
    %85 = vector.shape_cast %84 : vector<2x8x8x8xf32> to vector<128x8xf32>
    %c0_136 = arith.constant 0 : index
    %c2_137 = arith.constant 2 : index
    %c1_138 = arith.constant 1 : index
    %c0_139 = arith.constant 0 : index
    %86 = vector.load %arg11[%c0_136, %c2_137, %c1_138, %c0_139] : memref<2x10x10x8xf32, #tpu.memory_space<vmem>>, vector<2x8x8x8xf32>
    %87 = vector.shape_cast %86 : vector<2x8x8x8xf32> to vector<128x8xf32>
    %c0_140 = arith.constant 0 : index
    %c2_141 = arith.constant 2 : index
    %c2_142 = arith.constant 2 : index
    %c0_143 = arith.constant 0 : index
    %88 = vector.load %arg11[%c0_140, %c2_141, %c2_142, %c0_143] : memref<2x10x10x8xf32, #tpu.memory_space<vmem>>, vector<2x8x8x8xf32>
    %89 = vector.shape_cast %88 : vector<2x8x8x8xf32> to vector<128x8xf32>
    %90 = tpu.concatenate %73, %75, %77, %79, %81, %83, %85, %87, %89 in 1 : vector<128x8xf32>, vector<128x8xf32>, vector<128x8xf32>, vector<128x8xf32>, vector<128x8xf32>, vector<128x8xf32>, vector<128x8xf32>, vector<128x8xf32>, vector<128x8xf32> -> vector<128x72xf32>
    %c0_144 = arith.constant 0 : index
    %c0_145 = arith.constant 0 : index
    %91 = vector.load %arg5[%c0_144, %c0_145] : memref<72x8xf32, #tpu.memory_space<vmem>>, vector<72x8xf32>
    %cst_146 = arith.constant dense<0.000000e+00> : vector<128x8xf32>
    %92 = tpu.matmul %90, %91, %cst_146 {dimension_numbers = #tpu.dot_dimension_numbers<[1], [0], [0], [1], [0, 0, 1, 1], [], []>} : vector<128x72xf32>, vector<72x8xf32>, vector<128x8xf32> -> vector<128x8xf32>
    %cst_147 = arith.constant dense<0.000000e+00> : vector<8xf32>
    %93 = vector.multi_reduction <add>, %92, %cst_147 [0] : vector<128x8xf32> to vector<8xf32>
    %94 = vector.shape_cast %93 : vector<8xf32> to vector<1x8xf32>
    %cst_148 = arith.constant 1.280000e+02 : f32
    %95 = vector.broadcast %cst_148 : f32 to vector<1x8xf32>
    %96 = arith.divf %94, %95 : vector<1x8xf32>
    %97 = vector.broadcast %96 : vector<1x8xf32> to vector<128x8xf32>
    %98 = arith.subf %92, %97 : vector<128x8xf32>
    %99 = arith.mulf %98, %98 : vector<128x8xf32>
    %cst_149 = arith.constant dense<0.000000e+00> : vector<8xf32>
    %100 = vector.multi_reduction <add>, %99, %cst_149 [0] : vector<128x8xf32> to vector<8xf32>
    %101 = vector.shape_cast %100 : vector<8xf32> to vector<1x8xf32>
    %cst_150 = arith.constant 1.280000e+02 : f32
    %102 = vector.broadcast %cst_150 : f32 to vector<1x8xf32>
    %103 = arith.divf %101, %102 : vector<1x8xf32>
    %c0_151 = arith.constant 0 : index
    %c0_152 = arith.constant 0 : index
    %104 = vector.load %arg6[%c0_151, %c0_152] : memref<1x8xf32, #tpu.memory_space<vmem>>, vector<1x8xf32>
    %105 = arith.addf %96, %104 : vector<1x8xf32>
    %c0_153 = arith.constant 0 : index
    %c0_154 = arith.constant 0 : index
    %106 = vector.load %arg7[%c0_153, %c0_154] : memref<1x8xf32, #tpu.memory_space<vmem>>, vector<1x8xf32>
    %cst_155 = arith.constant 9.99999974E-6 : f32
    %107 = vector.broadcast %cst_155 : f32 to vector<1x8xf32>
    %108 = arith.addf %103, %107 : vector<1x8xf32>
    %109 = math.rsqrt %108 : vector<1x8xf32>
    %110 = arith.mulf %106, %109 : vector<1x8xf32>
    %c0_156 = arith.constant 0 : index
    %c0_157 = arith.constant 0 : index
    %111 = vector.load %arg8[%c0_156, %c0_157] : memref<1x8xf32, #tpu.memory_space<vmem>>, vector<1x8xf32>
    %c0_158 = arith.constant 0 : index
    %c0_159 = arith.constant 0 : index
    %112 = vector.load %arg6[%c0_158, %c0_159] : memref<1x8xf32, #tpu.memory_space<vmem>>, vector<1x8xf32>
    %113 = arith.subf %112, %105 : vector<1x8xf32>
    %114 = arith.mulf %113, %110 : vector<1x8xf32>
    %115 = arith.addf %111, %114 : vector<1x8xf32>
    %116 = vector.broadcast %110 : vector<1x8xf32> to vector<128x8xf32>
    %117 = arith.mulf %92, %116 : vector<128x8xf32>
    %118 = vector.broadcast %115 : vector<1x8xf32> to vector<128x8xf32>
    %119 = arith.addf %117, %118 : vector<128x8xf32>
    %cst_160 = arith.constant 0.000000e+00 : f32
    %120 = vector.broadcast %cst_160 : f32 to vector<128x8xf32>
    %121 = arith.maximumf %119, %120 : vector<128x8xf32>
    %122 = vector.shape_cast %121 : vector<128x8xf32> to vector<2x8x8x8xf32>
    %c0_161 = arith.constant 0 : index
    %c0_162 = arith.constant 0 : index
    %c0_163 = arith.constant 0 : index
    %c0_164 = arith.constant 0 : index
    %123 = vector.load %arg9[%c0_161, %c0_162, %c0_163, %c0_164] : memref<2x8x8x8xf32, #tpu.memory_space<vmem>>, vector<2x8x8x8xf32>
    tpu.vector_store %arg9[%c0_161, %c0_162, %c0_163, %c0_164], %122 {strides = array<i32>} : memref<2x8x8x8xf32, #tpu.memory_space<vmem>>, vector<2x8x8x8xf32>,
    return
  }
}

</mosaic_0001>

<llo_original>
// kernel: down_forward.1
$region0: #{down_forward.1}
  #allocation0 [shape = 'u32[]', space=smem, size = 0x4, offset = 0x4, fixed_abs, tag = 'smem constant byte address 0x4 - core index']
  #allocation1 [shape = 'u32[72,128]{1,0:T(1,128)}', space=vmem, size = 0x9000, scoped, tag = 'internal scratch']
  #allocation2 [shape = 'f32[2,10,10,4]{3,2,1,0:T(8,128)}', space=vmem, size = 0x28000, scoped, tag = 'scratch operand']
  #allocation3 [shape = 'f32[2,10,10,8]{3,2,1,0:T(8,128)}', space=vmem, size = 0x28000, scoped, tag = 'scratch operand']
  %s0 = inlined_call_operand.vmem [shape: f32[2,16,16,4], index: 0, kind: input, shape index: {}]
  %s1 = inlined_call_operand.vmem [shape: f32[36,8], index: 1, kind: input, shape index: {}]
  %s2 = inlined_call_operand.vmem [shape: f32[1,8], index: 2, kind: input, shape index: {}]
  %s3 = inlined_call_operand.vmem [shape: f32[1,8], index: 3, kind: input, shape index: {}]
  %s4 = inlined_call_operand.vmem [shape: f32[1,8], index: 4, kind: input, shape index: {}]
  %s5 = inlined_call_operand.vmem [shape: f32[72,8], index: 5, kind: input, shape index: {}]
  %s6 = inlined_call_operand.vmem [shape: f32[1,8], index: 6, kind: input, shape index: {}]
  %s7 = inlined_call_operand.vmem [shape: f32[1,8], index: 7, kind: input, shape index: {}]
  %s8 = inlined_call_operand.vmem [shape: f32[1,8], index: 8, kind: input, shape index: {}]
  %s9 = inlined_call_operand.vmem [shape: f32[2,8,8,8], index: 9, kind: output, shape index: {}]
  %s10 = sld [smem:[#allocation0]]
  $region46: #{down_forward.1} parent=0
    _
  %s12 = ssub.s32 1, %s10
  %s13 = scalar_select 0, %s12, %s10
  // Predicated region
  $region2: #{down_forward.1} parent=0 // pred_check
    _
  $region3: #{down_forward.1} parent=0 // pred_check_branch
    %15 = sbr.rel (0) target = $region5
  $region4: #{down_forward.1} parent=0 // pred_region
    _
  $region5: #{down_forward.1} parent=0 // pred_fallthru
    _
  // Predicated region
  $region6: #{down_forward.1} parent=0 // pred_check
    _
  $region7: #{down_forward.1} parent=0 // pred_check_branch
    %17 = sbr.rel (0) target = $region9
  $region8: #{down_forward.1} parent=0 // pred_region
    _
  $region9: #{down_forward.1} parent=0 // pred_fallthru
    _
  // Predicated region
  $region10: #{down_forward.1} parent=0 // pred_check
    _
  $region11: #{down_forward.1} parent=0 // pred_check_branch
    %19 = sbr.rel (0) target = $region13
  $region12: #{down_forward.1} parent=0 // pred_region
    _
  $region13: #{down_forward.1} parent=0 // pred_fallthru
    _
  // Predicated region
  $region14: #{down_forward.1} parent=0 // pred_check
    _
  $region15: #{down_forward.1} parent=0 // pred_check_branch
    %21 = sbr.rel (0) target = $region17
  $region16: #{down_forward.1} parent=0 // pred_region
    _
  $region17: #{down_forward.1} parent=0 // pred_fallthru
    _
  // Predicated region
  $region18: #{down_forward.1} parent=0 // pred_check
    _
  $region19: #{down_forward.1} parent=0 // pred_check_branch
    %23 = sbr.rel (0) target = $region21
  $region20: #{down_forward.1} parent=0 // pred_region
    _
  $region21: #{down_forward.1} parent=0 // pred_fallthru
    _
  // Predicated region
  $region22: #{down_forward.1} parent=0 // pred_check
    _
  $region23: #{down_forward.1} parent=0 // pred_check_branch
    %25 = sbr.rel (0) target = $region25
  $region24: #{down_forward.1} parent=0 // pred_region
    _
  $region25: #{down_forward.1} parent=0 // pred_fallthru
    _
  // Predicated region
  $region26: #{down_forward.1} parent=0 // pred_check
    _
  $region27: #{down_forward.1} parent=0 // pred_check_branch
    %27 = sbr.rel (0) target = $region29
  $region28: #{down_forward.1} parent=0 // pred_region
    _
  $region29: #{down_forward.1} parent=0 // pred_fallthru
    _
  // Predicated region
  $region30: #{down_forward.1} parent=0 // pred_check
    _
  $region31: #{down_forward.1} parent=0 // pred_check_branch
    %29 = sbr.rel (0) target = $region33
  $region32: #{down_forward.1} parent=0 // pred_region
    _
  $region33: #{down_forward.1} parent=0 // pred_fallthru
    _
  // Predicated region
  $region34: #{down_forward.1} parent=0 // pred_check
    _
  $region35: #{down_forward.1} parent=0 // pred_check_branch
    %31 = sbr.rel (0) target = $region37
  $region36: #{down_forward.1} parent=0 // pred_region
    _
  $region37: #{down_forward.1} parent=0 // pred_fallthru
    _
  %v32 = vld [vmem:[%s0] ss:$2 sm:$0xff]
  %s33 = scalar_lea.vmem %s0, 32
  %v34 = vld [vmem:[%s33] ss:$2 sm:$0xff]
  %s35 = scalar_lea.vmem %s0, 64
  %v36 = vld [vmem:[%s35] ss:$2 sm:$0xff]
  %s37 = scalar_lea.vmem %s0, 96
  %v38 = vld [vmem:[%s37] ss:$2 sm:$0xff]
  %s39 = scalar_lea.vmem %s0, 128
  %v40 = vld [vmem:[%s39] ss:$2 sm:$0xff]
  %s41 = scalar_lea.vmem %s0, 160
  %v42 = vld [vmem:[%s41] ss:$2 sm:$0xff]
  %s43 = scalar_lea.vmem %s0, 192
  %v44 = vld [vmem:[%s43] ss:$2 sm:$0xff]
  %s45 = scalar_lea.vmem %s0, 224
  %v46 = vld [vmem:[%s45] ss:$2 sm:$0xff]
  %s47 = scalar_lea.vmem %s0, 256
  %v48 = vld [vmem:[%s47] ss:$2 sm:$0xff]
  %s49 = scalar_lea.vmem %s0, 288
  %v50 = vld [vmem:[%s49] ss:$2 sm:$0xff]
  %s51 = scalar_lea.vmem %s0, 320
  %v52 = vld [vmem:[%s51] ss:$2 sm:$0xff]
  %s53 = scalar_lea.vmem %s0, 352
  %v54 = vld [vmem:[%s53] ss:$2 sm:$0xff]
  %s55 = scalar_lea.vmem %s0, 384
  %v56 = vld [vmem:[%s55] ss:$2 sm:$0xff]
  %s57 = scalar_lea.vmem %s0, 416
  %v58 = vld [vmem:[%s57] ss:$2 sm:$0xff]
  %s59 = scalar_lea.vmem %s0, 448
  %v60 = vld [vmem:[%s59] ss:$2 sm:$0xff]
  %s61 = scalar_lea.vmem %s0, 480
  %v62 = vld [vmem:[%s61] ss:$2 sm:$0xff]
  %s63 = scalar_lea.vmem %s0, 1
  %v64 = vld [vmem:[%s63] ss:$2 sm:$0xff]
  %s65 = scalar_lea.vmem %s0, 33
  %v66 = vld [vmem:[%s65] ss:$2 sm:$0xff]
  %s67 = scalar_lea.vmem %s0, 65
  %v68 = vld [vmem:[%s67] ss:$2 sm:$0xff]
  %s69 = scalar_lea.vmem %s0, 97
  %v70 = vld [vmem:[%s69] ss:$2 sm:$0xff]
  %s71 = scalar_lea.vmem %s0, 129
  %v72 = vld [vmem:[%s71] ss:$2 sm:$0xff]
  %s73 = scalar_lea.vmem %s0, 161
  %v74 = vld [vmem:[%s73] ss:$2 sm:$0xff]
  %s75 = scalar_lea.vmem %s0, 193
  %v76 = vld [vmem:[%s75] ss:$2 sm:$0xff]
  %s77 = scalar_lea.vmem %s0, 225
  %v78 = vld [vmem:[%s77] ss:$2 sm:$0xff]
  %s79 = scalar_lea.vmem %s0, 257
  %v80 = vld [vmem:[%s79] ss:$2 sm:$0xff]
  %s81 = scalar_lea.vmem %s0, 289
  %v82 = vld [vmem:[%s81] ss:$2 sm:$0xff]
  %s83 = scalar_lea.vmem %s0, 321
  %v84 = vld [vmem:[%s83] ss:$2 sm:$0xff]
  %s85 = scalar_lea.vmem %s0, 353
  %v86 = vld [vmem:[%s85] ss:$2 sm:$0xff]
  %s87 = scalar_lea.vmem %s0, 385
  %v88 = vld [vmem:[%s87] ss:$2 sm:$0xff]
  %s89 = scalar_lea.vmem %s0, 417
  %v90 = vld [vmem:[%s89] ss:$2 sm:$0xff]
  %s91 = scalar_lea.vmem %s0, 449
  %v92 = vld [vmem:[%s91] ss:$2 sm:$0xff]
  %s93 = scalar_lea.vmem %s0, 481
  %v94 = vld [vmem:[%s93] ss:$2 sm:$0xff]
  %s95 = scalar_lea.vmem %s0, 16
  %v96 = vld [vmem:[%s95] ss:$2 sm:$0xff]
  %s97 = scalar_lea.vmem %s95, 32
  %v98 = vld [vmem:[%s97] ss:$2 sm:$0xff]
  %s99 = scalar_lea.vmem %s95, 64
  %v100 = vld [vmem:[%s99] ss:$2 sm:$0xff]
  %s101 = scalar_lea.vmem %s95, 96
  %v102 = vld [vmem:[%s101] ss:$2 sm:$0xff]
  %s103 = scalar_lea.vmem %s95, 128
  %v104 = vld [vmem:[%s103] ss:$2 sm:$0xff]
  %s105 = scalar_lea.vmem %s95, 160
  %v106 = vld [vmem:[%s105] ss:$2 sm:$0xff]
  %s107 = scalar_lea.vmem %s95, 192
  %v108 = vld [vmem:[%s107] ss:$2 sm:$0xff]
  %s109 = scalar_lea.vmem %s95, 224
  %v110 = vld [vmem:[%s109] ss:$2 sm:$0xff]
  %s111 = scalar_lea.vmem %s95, 256
  %v112 = vld [vmem:[%s111] ss:$2 sm:$0xff]
  %s113 = scalar_lea.vmem %s95, 288
  %v114 = vld [vmem:[%s113] ss:$2 sm:$0xff]
  %s115 = scalar_lea.vmem %s95, 320
  %v116 = vld [vmem:[%s115] ss:$2 sm:$0xff]
  %s117 = scalar_lea.vmem %s95, 352
  %v118 = vld [vmem:[%s117] ss:$2 sm:$0xff]
  %s119 = scalar_lea.vmem %s95, 384
  %v120 = vld [vmem:[%s119] ss:$2 sm:$0xff]
  %s121 = scalar_lea.vmem %s95, 416
  %v122 = vld [vmem:[%s121] ss:$2 sm:$0xff]
  %s123 = scalar_lea.vmem %s95, 448
  %v124 = vld [vmem:[%s123] ss:$2 sm:$0xff]
  %s125 = scalar_lea.vmem %s95, 480
  %v126 = vld [vmem:[%s125] ss:$2 sm:$0xff]
  %s127 = scalar_lea.vmem %s95, 1
  %v128 = vld [vmem:[%s127] ss:$2 sm:$0xff]
  %s129 = scalar_lea.vmem %s95, 33
  %v130 = vld [vmem:[%s129] ss:$2 sm:$0xff]
  %s131 = scalar_lea.vmem %s95, 65
  %v132 = vld [vmem:[%s131] ss:$2 sm:$0xff]
  %s133 = scalar_lea.vmem %s95, 97
  %v134 = vld [vmem:[%s133] ss:$2 sm:$0xff]
  %s135 = scalar_lea.vmem %s95, 129
  %v136 = vld [vmem:[%s135] ss:$2 sm:$0xff]
  %s137 = scalar_lea.vmem %s95, 161
  %v138 = vld [vmem:[%s137] ss:$2 sm:$0xff]
  %s139 = scalar_lea.vmem %s95, 193
  %v140 = vld [vmem:[%s139] ss:$2 sm:$0xff]
  %s141 = scalar_lea.vmem %s95, 225
  %v142 = vld [vmem:[%s141] ss:$2 sm:$0xff]
  %s143 = scalar_lea.vmem %s95, 257
  %v144 = vld [vmem:[%s143] ss:$2 sm:$0xff]
  %s145 = scalar_lea.vmem %s95, 289
  %v146 = vld [vmem:[%s145] ss:$2 sm:$0xff]
  %s147 = scalar_lea.vmem %s95, 321
  %v148 = vld [vmem:[%s147] ss:$2 sm:$0xff]
  %s149 = scalar_lea.vmem %s95, 353
  %v150 = vld [vmem:[%s149] ss:$2 sm:$0xff]
  %s151 = scalar_lea.vmem %s95, 385
  %v152 = vld [vmem:[%s151] ss:$2 sm:$0xff]
  %s153 = scalar_lea.vmem %s95, 417
  %v154 = vld [vmem:[%s153] ss:$2 sm:$0xff]
  %s155 = scalar_lea.vmem %s95, 449
  %v156 = vld [vmem:[%s155] ss:$2 sm:$0xff]
  %s157 = scalar_lea.vmem %s95, 481
  %v158 = vld [vmem:[%s157] ss:$2 sm:$0xff]
  %v159 = vmax.f32 %v32, %v64
  %v160 = vmax.f32 %v34, %v66
  %v161 = vmax.f32 %v36, %v68
  %v162 = vmax.f32 %v38, %v70
  %v163 = vmax.f32 %v40, %v72
  %v164 = vmax.f32 %v42, %v74
  %v165 = vmax.f32 %v44, %v76
  %v166 = vmax.f32 %v46, %v78
  %v167 = vmax.f32 %v48, %v80
  %v168 = vmax.f32 %v50, %v82
  %v169 = vmax.f32 %v52, %v84
  %v170 = vmax.f32 %v54, %v86
  %v171 = vmax.f32 %v56, %v88
  %v172 = vmax.f32 %v58, %v90
  %v173 = vmax.f32 %v60, %v92
  %v174 = vmax.f32 %v62, %v94
  %v175 = vmax.f32 %v96, %v128
  %v176 = vmax.f32 %v98, %v130
  %v177 = vmax.f32 %v100, %v132
  %v178 = vmax.f32 %v102, %v134
  %v179 = vmax.f32 %v104, %v136
  %v180 = vmax.f32 %v106, %v138
  %v181 = vmax.f32 %v108, %v140
  %v182 = vmax.f32 %v110, %v142
  %v183 = vmax.f32 %v112, %v144
  %v184 = vmax.f32 %v114, %v146
  %v185 = vmax.f32 %v116, %v148
  %v186 = vmax.f32 %v118, %v150
  %v187 = vmax.f32 %v120, %v152
  %v188 = vmax.f32 %v122, %v154
  %v189 = vmax.f32 %v124, %v156
  %v190 = vmax.f32 %v126, %v158
  %v191 = vmax.f32 %v159, %v175
  %v192 = vmax.f32 %v160, %v176
  %v193 = vmax.f32 %v161, %v177
  %v194 = vmax.f32 %v162, %v178
  %v195 = vmax.f32 %v163, %v179
  %v196 = vmax.f32 %v164, %v180
  %v197 = vmax.f32 %v165, %v181
  %v198 = vmax.f32 %v166, %v182
  %v199 = vmax.f32 %v167, %v183
  %v200 = vmax.f32 %v168, %v184
  %v201 = vmax.f32 %v169, %v185
  %v202 = vmax.f32 %v170, %v186
  %v203 = vmax.f32 %v171, %v187
  %v204 = vmax.f32 %v172, %v188
  %v205 = vmax.f32 %v173, %v189
  %v206 = vmax.f32 %v174, %v190
  %vm207 = vcmask 31744
  %208 = vst.msk [vmem:[#allocation2] sm:$0xff] %vm207, 0.0
  %vm209 = vcmask 25600
  %210 = vst.msk [vmem:[#allocation2 + $0x8] sm:$0x3] %vm209, 0.0
  %211 = vst.msk [vmem:[#allocation2 + $0xa0] sm:$0xff] %vm207, 0.0
  %212 = vst.msk [vmem:[#allocation2 + $0xa8] sm:$0x3] %vm209, 0.0
  %s213 = scalar_lea.vmem [#allocation2], 144
  %214 = vst.msk [vmem:[%s213] sm:$0xff] %vm207, 0.0
  %215 = vst.msk [vmem:[%s213 + $0x8] sm:$0x3] %vm209, 0.0
  %216 = vst.msk [vmem:[%s213 + $0xa0] sm:$0xff] %vm207, 0.0
  %217 = vst.msk [vmem:[%s213 + $0xa8] sm:$0x3] %vm209, 0.0
  %vm218 = vcmask 24576
  %219 = vst.msk [vmem:[#allocation2] sm:$0x1] %vm218, 0.0
  %220 = vst.msk [vmem:[#allocation2 + $0x10] sm:$0x1] %vm218, 0.0
  %221 = vst.msk [vmem:[#allocation2 + $0x20] sm:$0x1] %vm218, 0.0
  %222 = vst.msk [vmem:[#allocation2 + $0x30] sm:$0x1] %vm218, 0.0
  %223 = vst.msk [vmem:[#allocation2 + $0x40] sm:$0x1] %vm218, 0.0
  %224 = vst.msk [vmem:[#allocation2 + $0x50] sm:$0x1] %vm218, 0.0
  %225 = vst.msk [vmem:[#allocation2 + $0x60] sm:$0x1] %vm218, 0.0
  %226 = vst.msk [vmem:[#allocation2 + $0x70] sm:$0x1] %vm218, 0.0
  %227 = vst.msk [vmem:[#allocation2 + $0x80] sm:$0x1] %vm218, 0.0
  %228 = vst.msk [vmem:[#allocation2 + $0x90] sm:$0x1] %vm218, 0.0
  %229 = vst.msk [vmem:[#allocation2 + $0xa0] sm:$0x1] %vm218, 0.0
  %230 = vst.msk [vmem:[#allocation2 + $0xb0] sm:$0x1] %vm218, 0.0
  %231 = vst.msk [vmem:[#allocation2 + $0xc0] sm:$0x1] %vm218, 0.0
  %232 = vst.msk [vmem:[#allocation2 + $0xd0] sm:$0x1] %vm218, 0.0
  %233 = vst.msk [vmem:[#allocation2 + $0xe0] sm:$0x1] %vm218, 0.0
  %234 = vst.msk [vmem:[#allocation2 + $0xf0] sm:$0x1] %vm218, 0.0
  %235 = vst.msk [vmem:[#allocation2 + $0x100] sm:$0x1] %vm218, 0.0
  %236 = vst.msk [vmem:[#allocation2 + $0x110] sm:$0x1] %vm218, 0.0
  %237 = vst.msk [vmem:[#allocation2 + $0x120] sm:$0x1] %vm218, 0.0
  %238 = vst.msk [vmem:[#allocation2 + $0x130] sm:$0x1] %vm218, 0.0
  %239 = vst.msk [vmem:[#allocation2 + $0x9] sm:$0x1] %vm218, 0.0
  %240 = vst.msk [vmem:[#allocation2 + $0x19] sm:$0x1] %vm218, 0.0
  %241 = vst.msk [vmem:[#allocation2 + $0x29] sm:$0x1] %vm218, 0.0
  %242 = vst.msk [vmem:[#allocation2 + $0x39] sm:$0x1] %vm218, 0.0
  %243 = vst.msk [vmem:[#allocation2 + $0x49] sm:$0x1] %vm218, 0.0
  %244 = vst.msk [vmem:[#allocation2 + $0x59] sm:$0x1] %vm218, 0.0
  %245 = vst.msk [vmem:[#allocation2 + $0x69] sm:$0x1] %vm218, 0.0
  %246 = vst.msk [vmem:[#allocation2 + $0x79] sm:$0x1] %vm218, 0.0
  %247 = vst.msk [vmem:[#allocation2 + $0x89] sm:$0x1] %vm218, 0.0
  %248 = vst.msk [vmem:[#allocation2 + $0x99] sm:$0x1] %vm218, 0.0
  %249 = vst.msk [vmem:[#allocation2 + $0xa9] sm:$0x1] %vm218, 0.0
  %250 = vst.msk [vmem:[#allocation2 + $0xb9] sm:$0x1] %vm218, 0.0
  %251 = vst.msk [vmem:[#allocation2 + $0xc9] sm:$0x1] %vm218, 0.0
  %252 = vst.msk [vmem:[#allocation2 + $0xd9] sm:$0x1] %vm218, 0.0
  %253 = vst.msk [vmem:[#allocation2 + $0xe9] sm:$0x1] %vm218, 0.0
  %254 = vst.msk [vmem:[#allocation2 + $0xf9] sm:$0x1] %vm218, 0.0
  %255 = vst.msk [vmem:[#allocation2 + $0x109] sm:$0x1] %vm218, 0.0
  %256 = vst.msk [vmem:[#allocation2 + $0x119] sm:$0x1] %vm218, 0.0
  %257 = vst.msk [vmem:[#allocation2 + $0x129] sm:$0x1] %vm218, 0.0
  %258 = vst.msk [vmem:[#allocation2 + $0x139] sm:$0x1] %vm218, 0.0
  %s259 = scalar_lea.vmem [#allocation2], 16
  %260 = vst.msk [vmem:[%s259 + $0x1] sm:$0xff] %vm207, %v191
  %261 = vst.msk [vmem:[%s259 + $0x11] sm:$0xff] %vm207, %v192
  %262 = vst.msk [vmem:[%s259 + $0x21] sm:$0xff] %vm207, %v193
  %263 = vst.msk [vmem:[%s259 + $0x31] sm:$0xff] %vm207, %v194
  %264 = vst.msk [vmem:[%s259 + $0x41] sm:$0xff] %vm207, %v195
  %265 = vst.msk [vmem:[%s259 + $0x51] sm:$0xff] %vm207, %v196
  %266 = vst.msk [vmem:[%s259 + $0x61] sm:$0xff] %vm207, %v197
  %267 = vst.msk [vmem:[%s259 + $0x71] sm:$0xff] %vm207, %v198
  %268 = vst.msk [vmem:[%s259 + $0xa1] sm:$0xff] %vm207, %v199
  %269 = vst.msk [vmem:[%s259 + $0xb1] sm:$0xff] %vm207, %v200
  %270 = vst.msk [vmem:[%s259 + $0xc1] sm:$0xff] %vm207, %v201
  %271 = vst.msk [vmem:[%s259 + $0xd1] sm:$0xff] %vm207, %v202
  %272 = vst.msk [vmem:[%s259 + $0xe1] sm:$0xff] %vm207, %v203
  %273 = vst.msk [vmem:[%s259 + $0xf1] sm:$0xff] %vm207, %v204
  %274 = vst.msk [vmem:[%s259 + $0x101] sm:$0xff] %vm207, %v205
  %275 = vst.msk [vmem:[%s259 + $0x111] sm:$0xff] %vm207, %v206
  %v276 = vld [vmem:[#allocation2] sm:$0xff]
  %v277 = vld [vmem:[#allocation2 + $0x10] sm:$0xff]
  %v278 = vld [vmem:[#allocation2 + $0x20] sm:$0xff]
  %v279 = vld [vmem:[#allocation2 + $0x30] sm:$0xff]
  %v280 = vld [vmem:[#allocation2 + $0x40] sm:$0xff]
  %v281 = vld [vmem:[#allocation2 + $0x50] sm:$0xff]
  %v282 = vld [vmem:[#allocation2 + $0x60] sm:$0xff]
  %v283 = vld [vmem:[#allocation2 + $0x70] sm:$0xff]
  %v284 = vld [vmem:[#allocation2 + $0xa0] sm:$0xff]
  %v285 = vld [vmem:[#allocation2 + $0xb0] sm:$0xff]
  %v286 = vld [vmem:[#allocation2 + $0xc0] sm:$0xff]
  %v287 = vld [vmem:[#allocation2 + $0xd0] sm:$0xff]
  %v288 = vld [vmem:[#allocation2 + $0xe0] sm:$0xff]
  %v289 = vld [vmem:[#allocation2 + $0xf0] sm:$0xff]
  %v290 = vld [vmem:[#allocation2 + $0x100] sm:$0xff]
  %v291 = vld [vmem:[#allocation2 + $0x110] sm:$0xff]
  %v292 = vld [vmem:[#allocation2 + $0x1] sm:$0xff]
  %v293 = vld [vmem:[#allocation2 + $0x11] sm:$0xff]
  %v294 = vld [vmem:[#allocation2 + $0x21] sm:$0xff]
  %v295 = vld [vmem:[#allocation2 + $0x31] sm:$0xff]
  %v296 = vld [vmem:[#allocation2 + $0x41] sm:$0xff]
  %v297 = vld [vmem:[#allocation2 + $0x51] sm:$0xff]
  %v298 = vld [vmem:[#allocation2 + $0x61] sm:$0xff]
  %v299 = vld [vmem:[#allocation2 + $0x71] sm:$0xff]
  %v300 = vld [vmem:[#allocation2 + $0xa1] sm:$0xff]
  %v301 = vld [vmem:[#allocation2 + $0xb1] sm:$0xff]
  %v302 = vld [vmem:[#allocation2 + $0xc1] sm:$0xff]
  %v303 = vld [vmem:[#allocation2 + $0xd1] sm:$0xff]
  %v304 = vld [vmem:[#allocation2 + $0xe1] sm:$0xff]
  %v305 = vld [vmem:[#allocation2 + $0xf1] sm:$0xff]
  %v306 = vld [vmem:[#allocation2 + $0x101] sm:$0xff]
  %v307 = vld [vmem:[#allocation2 + $0x111] sm:$0xff]
  %v308 = vld [vmem:[#allocation2 + $0x2] sm:$0xff]
  %v309 = vld [vmem:[#allocation2 + $0x12] sm:$0xff]
  %v310 = vld [vmem:[#allocation2 + $0x22] sm:$0xff]
  %v311 = vld [vmem:[#allocation2 + $0x32] sm:$0xff]
  %v312 = vld [vmem:[#allocation2 + $0x42] sm:$0xff]
  %v313 = vld [vmem:[#allocation2 + $0x52] sm:$0xff]
  %v314 = vld [vmem:[#allocation2 + $0x62] sm:$0xff]
  %v315 = vld [vmem:[#allocation2 + $0x72] sm:$0xff]
  %v316 = vld [vmem:[#allocation2 + $0xa2] sm:$0xff]
  %v317 = vld [vmem:[#allocation2 + $0xb2] sm:$0xff]
  %v318 = vld [vmem:[#allocation2 + $0xc2] sm:$0xff]
  %v319 = vld [vmem:[#allocation2 + $0xd2] sm:$0xff]
  %v320 = vld [vmem:[#allocation2 + $0xe2] sm:$0xff]
  %v321 = vld [vmem:[#allocation2 + $0xf2] sm:$0xff]
  %v322 = vld [vmem:[#allocation2 + $0x102] sm:$0xff]
  %v323 = vld [vmem:[#allocation2 + $0x112] sm:$0xff]
  %v324 = vld [vmem:[%s259] sm:$0xff]
  %v325 = vld [vmem:[%s259 + $0x10] sm:$0xff]
  %v326 = vld [vmem:[%s259 + $0x20] sm:$0xff]
  %v327 = vld [vmem:[%s259 + $0x30] sm:$0xff]
  %v328 = vld [vmem:[%s259 + $0x40] sm:$0xff]
  %v329 = vld [vmem:[%s259 + $0x50] sm:$0xff]
  %v330 = vld [vmem:[%s259 + $0x60] sm:$0xff]
  %v331 = vld [vmem:[%s259 + $0x70] sm:$0xff]
  %v332 = vld [vmem:[%s259 + $0xa0] sm:$0xff]
  %v333 = vld [vmem:[%s259 + $0xb0] sm:$0xff]
  %v334 = vld [vmem:[%s259 + $0xc0] sm:$0xff]
  %v335 = vld [vmem:[%s259 + $0xd0] sm:$0xff]
  %v336 = vld [vmem:[%s259 + $0xe0] sm:$0xff]
  %v337 = vld [vmem:[%s259 + $0xf0] sm:$0xff]
  %v338 = vld [vmem:[%s259 + $0x100] sm:$0xff]
  %v339 = vld [vmem:[%s259 + $0x110] sm:$0xff]
  %v340 = vld [vmem:[%s259 + $0x1] sm:$0xff]
  %v341 = vld [vmem:[%s259 + $0x11] sm:$0xff]
  %v342 = vld [vmem:[%s259 + $0x21] sm:$0xff]
  %v343 = vld [vmem:[%s259 + $0x31] sm:$0xff]
  %v344 = vld [vmem:[%s259 + $0x41] sm:$0xff]
  %v345 = vld [vmem:[%s259 + $0x51] sm:$0xff]
  %v346 = vld [vmem:[%s259 + $0x61] sm:$0xff]
  %v347 = vld [vmem:[%s259 + $0x71] sm:$0xff]
  %v348 = vld [vmem:[%s259 + $0xa1] sm:$0xff]
  %v349 = vld [vmem:[%s259 + $0xb1] sm:$0xff]
  %v350 = vld [vmem:[%s259 + $0xc1] sm:$0xff]
  %v351 = vld [vmem:[%s259 + $0xd1] sm:$0xff]
  %v352 = vld [vmem:[%s259 + $0xe1] sm:$0xff]
  %v353 = vld [vmem:[%s259 + $0xf1] sm:$0xff]
  %v354 = vld [vmem:[%s259 + $0x101] sm:$0xff]
  %v355 = vld [vmem:[%s259 + $0x111] sm:$0xff]
  %v356 = vld [vmem:[%s259 + $0x2] sm:$0xff]
  %v357 = vld [vmem:[%s259 + $0x12] sm:$0xff]
  %v358 = vld [vmem:[%s259 + $0x22] sm:$0xff]
  %v359 = vld [vmem:[%s259 + $0x32] sm:$0xff]
  %v360 = vld [vmem:[%s259 + $0x42] sm:$0xff]
  %v361 = vld [vmem:[%s259 + $0x52] sm:$0xff]
  %v362 = vld [vmem:[%s259 + $0x62] sm:$0xff]
  %v363 = vld [vmem:[%s259 + $0x72] sm:$0xff]
  %v364 = vld [vmem:[%s259 + $0xa2] sm:$0xff]
  %v365 = vld [vmem:[%s259 + $0xb2] sm:$0xff]
  %v366 = vld [vmem:[%s259 + $0xc2] sm:$0xff]
  %v367 = vld [vmem:[%s259 + $0xd2] sm:$0xff]
  %v368 = vld [vmem:[%s259 + $0xe2] sm:$0xff]
  %v369 = vld [vmem:[%s259 + $0xf2] sm:$0xff]
  %v370 = vld [vmem:[%s259 + $0x102] sm:$0xff]
  %v371 = vld [vmem:[%s259 + $0x112] sm:$0xff]
  %s372 = scalar_lea.vmem [#allocation2], 32
  %v373 = vld [vmem:[%s372] sm:$0xff]
  %v374 = vld [vmem:[%s372 + $0x10] sm:$0xff]
  %v375 = vld [vmem:[%s372 + $0x20] sm:$0xff]
  %v376 = vld [vmem:[%s372 + $0x30] sm:$0xff]
  %v377 = vld [vmem:[%s372 + $0x40] sm:$0xff]
  %v378 = vld [vmem:[%s372 + $0x50] sm:$0xff]
  %v379 = vld [vmem:[%s372 + $0x60] sm:$0xff]
  %v380 = vld [vmem:[%s372 + $0x70] sm:$0xff]
  %v381 = vld [vmem:[%s372 + $0xa0] sm:$0xff]
  %v382 = vld [vmem:[%s372 + $0xb0] sm:$0xff]
  %v383 = vld [vmem:[%s372 + $0xc0] sm:$0xff]
  %v384 = vld [vmem:[%s372 + $0xd0] sm:$0xff]
  %v385 = vld [vmem:[%s372 + $0xe0] sm:$0xff]
  %v386 = vld [vmem:[%s372 + $0xf0] sm:$0xff]
  %v387 = vld [vmem:[%s372 + $0x100] sm:$0xff]
  %v388 = vld [vmem:[%s372 + $0x110] sm:$0xff]
  %v389 = vld [vmem:[%s372 + $0x1] sm:$0xff]
  %v390 = vld [vmem:[%s372 + $0x11] sm:$0xff]
  %v391 = vld [vmem:[%s372 + $0x21] sm:$0xff]
  %v392 = vld [vmem:[%s372 + $0x31] sm:$0xff]
  %v393 = vld [vmem:[%s372 + $0x41] sm:$0xff]
  %v394 = vld [vmem:[%s372 + $0x51] sm:$0xff]
  %v395 = vld [vmem:[%s372 + $0x61] sm:$0xff]
  %v396 = vld [vmem:[%s372 + $0x71] sm:$0xff]
  %v397 = vld [vmem:[%s372 + $0xa1] sm:$0xff]
  %v398 = vld [vmem:[%s372 + $0xb1] sm:$0xff]
  %v399 = vld [vmem:[%s372 + $0xc1] sm:$0xff]
  %v400 = vld [vmem:[%s372 + $0xd1] sm:$0xff]
  %v401 = vld [vmem:[%s372 + $0xe1] sm:$0xff]
  %v402 = vld [vmem:[%s372 + $0xf1] sm:$0xff]
  %v403 = vld [vmem:[%s372 + $0x101] sm:$0xff]
  %v404 = vld [vmem:[%s372 + $0x111] sm:$0xff]
  %v405 = vld [vmem:[%s372 + $0x2] sm:$0xff]
  %v406 = vld [vmem:[%s372 + $0x12] sm:$0xff]
  %v407 = vld [vmem:[%s372 + $0x22] sm:$0xff]
  %v408 = vld [vmem:[%s372 + $0x32] sm:$0xff]
  %v409 = vld [vmem:[%s372 + $0x42] sm:$0xff]
  %v410 = vld [vmem:[%s372 + $0x52] sm:$0xff]
  %v411 = vld [vmem:[%s372 + $0x62] sm:$0xff]
  %v412 = vld [vmem:[%s372 + $0x72] sm:$0xff]
  %v413 = vld [vmem:[%s372 + $0xa2] sm:$0xff]
  %v414 = vld [vmem:[%s372 + $0xb2] sm:$0xff]
  %v415 = vld [vmem:[%s372 + $0xc2] sm:$0xff]
  %v416 = vld [vmem:[%s372 + $0xd2] sm:$0xff]
  %v417 = vld [vmem:[%s372 + $0xe2] sm:$0xff]
  %v418 = vld [vmem:[%s372 + $0xf2] sm:$0xff]
  %v419 = vld [vmem:[%s372 + $0x102] sm:$0xff]
  %v420 = vld [vmem:[%s372 + $0x112] sm:$0xff]
  %437 = vrot.lane.b32.xlu0 %v292, 4
  %v438 = vpop.permute.xlu0 %437
  %439 = vrot.lane.b32.xlu0 %v293, 4
  %v440 = vpop.permute.xlu0 %439
  %441 = vrot.lane.b32.xlu0 %v294, 4
  %v442 = vpop.permute.xlu0 %441
  %443 = vrot.lane.b32.xlu0 %v295, 4
  %v444 = vpop.permute.xlu0 %443
  %445 = vrot.lane.b32.xlu0 %v296, 4
  %v446 = vpop.permute.xlu0 %445
  %447 = vrot.lane.b32.xlu0 %v297, 4
  %v448 = vpop.permute.xlu0 %447
  %449 = vrot.lane.b32.xlu0 %v298, 4
  %v450 = vpop.permute.xlu0 %449
  %451 = vrot.lane.b32.xlu0 %v299, 4
  %v452 = vpop.permute.xlu0 %451
  %453 = vrot.lane.b32.xlu0 %v300, 4
  %v454 = vpop.permute.xlu0 %453
  %455 = vrot.lane.b32.xlu0 %v301, 4
  %v456 = vpop.permute.xlu0 %455
  %457 = vrot.lane.b32.xlu0 %v302, 4
  %v458 = vpop.permute.xlu0 %457
  %459 = vrot.lane.b32.xlu0 %v303, 4
  %v460 = vpop.permute.xlu0 %459
  %461 = vrot.lane.b32.xlu0 %v304, 4
  %v462 = vpop.permute.xlu0 %461
  %463 = vrot.lane.b32.xlu0 %v305, 4
  %v464 = vpop.permute.xlu0 %463
  %465 = vrot.lane.b32.xlu0 %v306, 4
  %v466 = vpop.permute.xlu0 %465
  %467 = vrot.lane.b32.xlu0 %v307, 4
  %v468 = vpop.permute.xlu0 %467
  %501 = vrot.lane.b32.xlu0 %v308, 8
  %v502 = vpop.permute.xlu0 %501
  %503 = vrot.lane.b32.xlu0 %v309, 8
  %v504 = vpop.permute.xlu0 %503
  %505 = vrot.lane.b32.xlu0 %v310, 8
  %v506 = vpop.permute.xlu0 %505
  %507 = vrot.lane.b32.xlu0 %v311, 8
  %v508 = vpop.permute.xlu0 %507
  %509 = vrot.lane.b32.xlu0 %v312, 8
  %v510 = vpop.permute.xlu0 %509
  %511 = vrot.lane.b32.xlu0 %v313, 8
  %v512 = vpop.permute.xlu0 %511
  %513 = vrot.lane.b32.xlu0 %v314, 8
  %v514 = vpop.permute.xlu0 %513
  %515 = vrot.lane.b32.xlu0 %v315, 8
  %v516 = vpop.permute.xlu0 %515
  %517 = vrot.lane.b32.xlu0 %v316, 8
  %v518 = vpop.permute.xlu0 %517
  %519 = vrot.lane.b32.xlu0 %v317, 8
  %v520 = vpop.permute.xlu0 %519
  %521 = vrot.lane.b32.xlu0 %v318, 8
  %v522 = vpop.permute.xlu0 %521
  %523 = vrot.lane.b32.xlu0 %v319, 8
  %v524 = vpop.permute.xlu0 %523
  %525 = vrot.lane.b32.xlu0 %v320, 8
  %v526 = vpop.permute.xlu0 %525
  %527 = vrot.lane.b32.xlu0 %v321, 8
  %v528 = vpop.permute.xlu0 %527
  %529 = vrot.lane.b32.xlu0 %v322, 8
  %v530 = vpop.permute.xlu0 %529
  %531 = vrot.lane.b32.xlu0 %v323, 8
  %v532 = vpop.permute.xlu0 %531
  %565 = vrot.lane.b32.xlu0 %v324, 12
  %v566 = vpop.permute.xlu0 %565
  %567 = vrot.lane.b32.xlu0 %v325, 12
  %v568 = vpop.permute.xlu0 %567
  %569 = vrot.lane.b32.xlu0 %v326, 12
  %v570 = vpop.permute.xlu0 %569
  %571 = vrot.lane.b32.xlu0 %v327, 12
  %v572 = vpop.permute.xlu0 %571
  %573 = vrot.lane.b32.xlu0 %v328, 12
  %v574 = vpop.permute.xlu0 %573
  %575 = vrot.lane.b32.xlu0 %v329, 12
  %v576 = vpop.permute.xlu0 %575
  %577 = vrot.lane.b32.xlu0 %v330, 12
  %v578 = vpop.permute.xlu0 %577
  %579 = vrot.lane.b32.xlu0 %v331, 12
  %v580 = vpop.permute.xlu0 %579
  %581 = vrot.lane.b32.xlu0 %v332, 12
  %v582 = vpop.permute.xlu0 %581
  %583 = vrot.lane.b32.xlu0 %v333, 12
  %v584 = vpop.permute.xlu0 %583
  %585 = vrot.lane.b32.xlu0 %v334, 12
  %v586 = vpop.permute.xlu0 %585
  %587 = vrot.lane.b32.xlu0 %v335, 12
  %v588 = vpop.permute.xlu0 %587
  %589 = vrot.lane.b32.xlu0 %v336, 12
  %v590 = vpop.permute.xlu0 %589
  %591 = vrot.lane.b32.xlu0 %v337, 12
  %v592 = vpop.permute.xlu0 %591
  %593 = vrot.lane.b32.xlu0 %v338, 12
  %v594 = vpop.permute.xlu0 %593
  %595 = vrot.lane.b32.xlu0 %v339, 12
  %v596 = vpop.permute.xlu0 %595
  %629 = vrot.lane.b32.xlu0 %v340, 16
  %v630 = vpop.permute.xlu0 %629
  %631 = vrot.lane.b32.xlu0 %v341, 16
  %v632 = vpop.permute.xlu0 %631
  %633 = vrot.lane.b32.xlu0 %v342, 16
  %v634 = vpop.permute.xlu0 %633
  %635 = vrot.lane.b32.xlu0 %v343, 16
  %v636 = vpop.permute.xlu0 %635
  %637 = vrot.lane.b32.xlu0 %v344, 16
  %v638 = vpop.permute.xlu0 %637
  %639 = vrot.lane.b32.xlu0 %v345, 16
  %v640 = vpop.permute.xlu0 %639
  %641 = vrot.lane.b32.xlu0 %v346, 16
  %v642 = vpop.permute.xlu0 %641
  %643 = vrot.lane.b32.xlu0 %v347, 16
  %v644 = vpop.permute.xlu0 %643
  %645 = vrot.lane.b32.xlu0 %v348, 16
  %v646 = vpop.permute.xlu0 %645
  %647 = vrot.lane.b32.xlu0 %v349, 16
  %v648 = vpop.permute.xlu0 %647
  %649 = vrot.lane.b32.xlu0 %v350, 16
  %v650 = vpop.permute.xlu0 %649
  %651 = vrot.lane.b32.xlu0 %v351, 16
  %v652 = vpop.permute.xlu0 %651
  %653 = vrot.lane.b32.xlu0 %v352, 16
  %v654 = vpop.permute.xlu0 %653
  %655 = vrot.lane.b32.xlu0 %v353, 16
  %v656 = vpop.permute.xlu0 %655
  %657 = vrot.lane.b32.xlu0 %v354, 16
  %v658 = vpop.permute.xlu0 %657
  %659 = vrot.lane.b32.xlu0 %v355, 16
  %v660 = vpop.permute.xlu0 %659
  %693 = vrot.lane.b32.xlu0 %v356, 20
  %v694 = vpop.permute.xlu0 %693
  %695 = vrot.lane.b32.xlu0 %v357, 20
  %v696 = vpop.permute.xlu0 %695
  %697 = vrot.lane.b32.xlu0 %v358, 20
  %v698 = vpop.permute.xlu0 %697
  %699 = vrot.lane.b32.xlu0 %v359, 20
  %v700 = vpop.permute.xlu0 %699
  %701 = vrot.lane.b32.xlu0 %v360, 20
  %v702 = vpop.permute.xlu0 %701
  %703 = vrot.lane.b32.xlu0 %v361, 20
  %v704 = vpop.permute.xlu0 %703
  %705 = vrot.lane.b32.xlu0 %v362, 20
  %v706 = vpop.permute.xlu0 %705
  %707 = vrot.lane.b32.xlu0 %v363, 20
  %v708 = vpop.permute.xlu0 %707
  %709 = vrot.lane.b32.xlu0 %v364, 20
  %v710 = vpop.permute.xlu0 %709
  %711 = vrot.lane.b32.xlu0 %v365, 20
  %v712 = vpop.permute.xlu0 %711
  %713 = vrot.lane.b32.xlu0 %v366, 20
  %v714 = vpop.permute.xlu0 %713
  %715 = vrot.lane.b32.xlu0 %v367, 20
  %v716 = vpop.permute.xlu0 %715
  %717 = vrot.lane.b32.xlu0 %v368, 20
  %v718 = vpop.permute.xlu0 %717
  %719 = vrot.lane.b32.xlu0 %v369, 20
  %v720 = vpop.permute.xlu0 %719
  %721 = vrot.lane.b32.xlu0 %v370, 20
  %v722 = vpop.permute.xlu0 %721
  %723 = vrot.lane.b32.xlu0 %v371, 20
  %v724 = vpop.permute.xlu0 %723
  %757 = vrot.lane.b32.xlu0 %v373, 24
  %v758 = vpop.permute.xlu0 %757
  %759 = vrot.lane.b32.xlu0 %v374, 24
  %v760 = vpop.permute.xlu0 %759
  %761 = vrot.lane.b32.xlu0 %v375, 24
  %v762 = vpop.permute.xlu0 %761
  %763 = vrot.lane.b32.xlu0 %v376, 24
  %v764 = vpop.permute.xlu0 %763
  %765 = vrot.lane.b32.xlu0 %v377, 24
  %v766 = vpop.permute.xlu0 %765
  %767 = vrot.lane.b32.xlu0 %v378, 24
  %v768 = vpop.permute.xlu0 %767
  %769 = vrot.lane.b32.xlu0 %v379, 24
  %v770 = vpop.permute.xlu0 %769
  %771 = vrot.lane.b32.xlu0 %v380, 24
  %v772 = vpop.permute.xlu0 %771
  %773 = vrot.lane.b32.xlu0 %v381, 24
  %v774 = vpop.permute.xlu0 %773
  %775 = vrot.lane.b32.xlu0 %v382, 24
  %v776 = vpop.permute.xlu0 %775
  %777 = vrot.lane.b32.xlu0 %v383, 24
  %v778 = vpop.permute.xlu0 %777
  %779 = vrot.lane.b32.xlu0 %v384, 24
  %v780 = vpop.permute.xlu0 %779
  %781 = vrot.lane.b32.xlu0 %v385, 24
  %v782 = vpop.permute.xlu0 %781
  %783 = vrot.lane.b32.xlu0 %v386, 24
  %v784 = vpop.permute.xlu0 %783
  %785 = vrot.lane.b32.xlu0 %v387, 24
  %v786 = vpop.permute.xlu0 %785
  %787 = vrot.lane.b32.xlu0 %v388, 24
  %v788 = vpop.permute.xlu0 %787
  %821 = vrot.lane.b32.xlu0 %v389, 28
  %v822 = vpop.permute.xlu0 %821
  %823 = vrot.lane.b32.xlu0 %v390, 28
  %v824 = vpop.permute.xlu0 %823
  %825 = vrot.lane.b32.xlu0 %v391, 28
  %v826 = vpop.permute.xlu0 %825
  %827 = vrot.lane.b32.xlu0 %v392, 28
  %v828 = vpop.permute.xlu0 %827
  %829 = vrot.lane.b32.xlu0 %v393, 28
  %v830 = vpop.permute.xlu0 %829
  %831 = vrot.lane.b32.xlu0 %v394, 28
  %v832 = vpop.permute.xlu0 %831
  %833 = vrot.lane.b32.xlu0 %v395, 28
  %v834 = vpop.permute.xlu0 %833
  %835 = vrot.lane.b32.xlu0 %v396, 28
  %v836 = vpop.permute.xlu0 %835
  %837 = vrot.lane.b32.xlu0 %v397, 28
  %v838 = vpop.permute.xlu0 %837
  %839 = vrot.lane.b32.xlu0 %v398, 28
  %v840 = vpop.permute.xlu0 %839
  %841 = vrot.lane.b32.xlu0 %v399, 28
  %v842 = vpop.permute.xlu0 %841
  %843 = vrot.lane.b32.xlu0 %v400, 28
  %v844 = vpop.permute.xlu0 %843
  %845 = vrot.lane.b32.xlu0 %v401, 28
  %v846 = vpop.permute.xlu0 %845
  %847 = vrot.lane.b32.xlu0 %v402, 28
  %v848 = vpop.permute.xlu0 %847
  %849 = vrot.lane.b32.xlu0 %v403, 28
  %v850 = vpop.permute.xlu0 %849
  %851 = vrot.lane.b32.xlu0 %v404, 28
  %v852 = vpop.permute.xlu0 %851
  %885 = vrot.lane.b32.xlu0 %v405, 32
  %v886 = vpop.permute.xlu0 %885
  %887 = vrot.lane.b32.xlu0 %v406, 32
  %v888 = vpop.permute.xlu0 %887
  %889 = vrot.lane.b32.xlu0 %v407, 32
  %v890 = vpop.permute.xlu0 %889
  %891 = vrot.lane.b32.xlu0 %v408, 32
  %v892 = vpop.permute.xlu0 %891
  %893 = vrot.lane.b32.xlu0 %v409, 32
  %v894 = vpop.permute.xlu0 %893
  %895 = vrot.lane.b32.xlu0 %v410, 32
  %v896 = vpop.permute.xlu0 %895
  %897 = vrot.lane.b32.xlu0 %v411, 32
  %v898 = vpop.permute.xlu0 %897
  %899 = vrot.lane.b32.xlu0 %v412, 32
  %v900 = vpop.permute.xlu0 %899
  %901 = vrot.lane.b32.xlu0 %v413, 32
  %v902 = vpop.permute.xlu0 %901
  %903 = vrot.lane.b32.xlu0 %v414, 32
  %v904 = vpop.permute.xlu0 %903
  %905 = vrot.lane.b32.xlu0 %v415, 32
  %v906 = vpop.permute.xlu0 %905
  %907 = vrot.lane.b32.xlu0 %v416, 32
  %v908 = vpop.permute.xlu0 %907
  %909 = vrot.lane.b32.xlu0 %v417, 32
  %v910 = vpop.permute.xlu0 %909
  %911 = vrot.lane.b32.xlu0 %v418, 32
  %v912 = vpop.permute.xlu0 %911
  %913 = vrot.lane.b32.xlu0 %v419, 32
  %v914 = vpop.permute.xlu0 %913
  %915 = vrot.lane.b32.xlu0 %v420, 32
  %v916 = vpop.permute.xlu0 %915
  %v933 = vsel %vm207, %v276, %v438
  %v934 = vsel %vm207, %v277, %v440
  %v935 = vsel %vm207, %v278, %v442
  %v936 = vsel %vm207, %v279, %v444
  %v937 = vsel %vm207, %v280, %v446
  %v938 = vsel %vm207, %v281, %v448
  %v939 = vsel %vm207, %v282, %v450
  %v940 = vsel %vm207, %v283, %v452
  %v941 = vsel %vm207, %v284, %v454
  %v942 = vsel %vm207, %v285, %v456
  %v943 = vsel %vm207, %v286, %v458
  %v944 = vsel %vm207, %v287, %v460
  %v945 = vsel %vm207, %v288, %v462
  %v946 = vsel %vm207, %v289, %v464
  %v947 = vsel %vm207, %v290, %v466
  %v948 = vsel %vm207, %v291, %v468
  %vm949 = vcmask 64512
  %v950 = vsel %vm949, %v933, %v502
  %v951 = vsel %vm949, %v934, %v504
  %v952 = vsel %vm949, %v935, %v506
  %v953 = vsel %vm949, %v936, %v508
  %v954 = vsel %vm949, %v937, %v510
  %v955 = vsel %vm949, %v938, %v512
  %v956 = vsel %vm949, %v939, %v514
  %v957 = vsel %vm949, %v940, %v516
  %v958 = vsel %vm949, %v941, %v518
  %v959 = vsel %vm949, %v942, %v520
  %v960 = vsel %vm949, %v943, %v522
  %v961 = vsel %vm949, %v944, %v524
  %v962 = vsel %vm949, %v945, %v526
  %v963 = vsel %vm949, %v946, %v528
  %v964 = vsel %vm949, %v947, %v530
  %v965 = vsel %vm949, %v948, %v532
  %vm966 = vcmask 97280
  %v967 = vsel %vm966, %v950, %v566
  %v968 = vsel %vm966, %v951, %v568
  %v969 = vsel %vm966, %v952, %v570
  %v970 = vsel %vm966, %v953, %v572
  %v971 = vsel %vm966, %v954, %v574
  %v972 = vsel %vm966, %v955, %v576
  %v973 = vsel %vm966, %v956, %v578
  %v974 = vsel %vm966, %v957, %v580
  %v975 = vsel %vm966, %v958, %v582
  %v976 = vsel %vm966, %v959, %v584
  %v977 = vsel %vm966, %v960, %v586
  %v978 = vsel %vm966, %v961, %v588
  %v979 = vsel %vm966, %v962, %v590
  %v980 = vsel %vm966, %v963, %v592
  %v981 = vsel %vm966, %v964, %v594
  %v982 = vsel %vm966, %v965, %v596
  %vm983 = vcmask 130048
  %v984 = vsel %vm983, %v967, %v630
  %v985 = vsel %vm983, %v968, %v632
  %v986 = vsel %vm983, %v969, %v634
  %v987 = vsel %vm983, %v970, %v636
  %v988 = vsel %vm983, %v971, %v638
  %v989 = vsel %vm983, %v972, %v640
  %v990 = vsel %vm983, %v973, %v642
  %v991 = vsel %vm983, %v974, %v644
  %v992 = vsel %vm983, %v975, %v646
  %v993 = vsel %vm983, %v976, %v648
  %v994 = vsel %vm983, %v977, %v650
  %v995 = vsel %vm983, %v978, %v652
  %v996 = vsel %vm983, %v979, %v654
  %v997 = vsel %vm983, %v980, %v656
  %v998 = vsel %vm983, %v981, %v658
  %v999 = vsel %vm983, %v982, %v660
  %vm1000 = vcmask 162816
  %v1001 = vsel %vm1000, %v984, %v694
  %v1002 = vsel %vm1000, %v985, %v696
  %v1003 = vsel %vm1000, %v986, %v698
  %v1004 = vsel %vm1000, %v987, %v700
  %v1005 = vsel %vm1000, %v988, %v702
  %v1006 = vsel %vm1000, %v989, %v704
  %v1007 = vsel %vm1000, %v990, %v706
  %v1008 = vsel %vm1000, %v991, %v708
  %v1009 = vsel %vm1000, %v992, %v710
  %v1010 = vsel %vm1000, %v993, %v712
  %v1011 = vsel %vm1000, %v994, %v714
  %v1012 = vsel %vm1000, %v995, %v716
  %v1013 = vsel %vm1000, %v996, %v718
  %v1014 = vsel %vm1000, %v997, %v720
  %v1015 = vsel %vm1000, %v998, %v722
  %v1016 = vsel %vm1000, %v999, %v724
  %vm1017 = vcmask 195584
  %v1018 = vsel %vm1017, %v1001, %v758
  %v1019 = vsel %vm1017, %v1002, %v760
  %v1020 = vsel %vm1017, %v1003, %v762
  %v1021 = vsel %vm1017, %v1004, %v764
  %v1022 = vsel %vm1017, %v1005, %v766
  %v1023 = vsel %vm1017, %v1006, %v768
  %v1024 = vsel %vm1017, %v1007, %v770
  %v1025 = vsel %vm1017, %v1008, %v772
  %v1026 = vsel %vm1017, %v1009, %v774
  %v1027 = vsel %vm1017, %v1010, %v776
  %v1028 = vsel %vm1017, %v1011, %v778
  %v1029 = vsel %vm1017, %v1012, %v780
  %v1030 = vsel %vm1017, %v1013, %v782
  %v1031 = vsel %vm1017, %v1014, %v784
  %v1032 = vsel %vm1017, %v1015, %v786
  %v1033 = vsel %vm1017, %v1016, %v788
  %vm1034 = vcmask 228352
  %v1035 = vsel %vm1034, %v1018, %v822
  %v1036 = vsel %vm1034, %v1019, %v824
  %v1037 = vsel %vm1034, %v1020, %v826
  %v1038 = vsel %vm1034, %v1021, %v828
  %v1039 = vsel %vm1034, %v1022, %v830
  %v1040 = vsel %vm1034, %v1023, %v832
  %v1041 = vsel %vm1034, %v1024, %v834
  %v1042 = vsel %vm1034, %v1025, %v836
  %v1043 = vsel %vm1034, %v1026, %v838
  %v1044 = vsel %vm1034, %v1027, %v840
  %v1045 = vsel %vm1034, %v1028, %v842
  %v1046 = vsel %vm1034, %v1029, %v844
  %v1047 = vsel %vm1034, %v1030, %v846
  %v1048 = vsel %vm1034, %v1031, %v848
  %v1049 = vsel %vm1034, %v1032, %v850
  %v1050 = vsel %vm1034, %v1033, %v852
  %vm1051 = vcmask 261120
  %v1052 = vsel %vm1051, %v1035, %v886
  %v1053 = vsel %vm1051, %v1036, %v888
  %v1054 = vsel %vm1051, %v1037, %v890
  %v1055 = vsel %vm1051, %v1038, %v892
  %v1056 = vsel %vm1051, %v1039, %v894
  %v1057 = vsel %vm1051, %v1040, %v896
  %v1058 = vsel %vm1051, %v1041, %v898
  %v1059 = vsel %vm1051, %v1042, %v900
  %v1060 = vsel %vm1051, %v1043, %v902
  %v1061 = vsel %vm1051, %v1044, %v904
  %v1062 = vsel %vm1051, %v1045, %v906
  %v1063 = vsel %vm1051, %v1046, %v908
  %v1064 = vsel %vm1051, %v1047, %v910
  %v1065 = vsel %vm1051, %v1048, %v912
  %v1066 = vsel %vm1051, %v1049, %v914
  %v1067 = vsel %vm1051, %v1050, %v916
  %v1068 = vld [vmem:[%s1] sm:$0xff]
  %v1069 = vld [vmem:[%s1 + $0x8] sm:$0xff]
  %v1070 = vld [vmem:[%s1 + $0x10] sm:$0xff]
  %v1071 = vld [vmem:[%s1 + $0x18] sm:$0xff]
  %v1072 = vld [vmem:[%s1 + $0x20] sm:$0xf]
  %vm1073 = vcmask 293888
  %v1075 = vsel %vm1073, %v1052, 0
  %v1078 = vsel %vm1073, %v1053, 0
  %v1081 = vsel %vm1073, %v1054, 0
  %v1084 = vsel %vm1073, %v1055, 0
  %v1087 = vsel %vm1073, %v1056, 0
  %v1090 = vsel %vm1073, %v1057, 0
  %v1093 = vsel %vm1073, %v1058, 0
  %v1096 = vsel %vm1073, %v1059, 0
  %v1099 = vsel %vm1073, %v1060, 0
  %v1102 = vsel %vm1073, %v1061, 0
  %v1105 = vsel %vm1073, %v1062, 0
  %v1108 = vsel %vm1073, %v1063, 0
  %v1111 = vsel %vm1073, %v1064, 0
  %v1114 = vsel %vm1073, %v1065, 0
  %v1117 = vsel %vm1073, %v1066, 0
  %v1120 = vsel %vm1073, %v1067, 0
  %vm1122 = vcmask 1043456
  %v1124 = vsel %vm1122, %v1072, 0
  %1126 = vmatpush.msra.mxu0 0.0
  %1127 = vmatpush.msra.mxu0 0.0
  %1128 = vmatpush.msra.mxu0 0.0
  %1129 = vmatpush.msra.mxu0 0.0
  %1130 = vmatpush.msra.mxu0 0.0
  %1131 = vmatpush.msra.mxu0 0.0
  %1132 = vmatpush.msra.mxu0 0.0
  %1133 = vmatpush.msra.mxu0 0.0
  %1134 = vmatpush.msra.mxu0 0.0
  %1135 = vmatpush.msra.mxu0 0.0
  %1136 = vmatpush.msra.mxu0 0.0
  %1137 = vmatpush.msra.mxu0 %v1124
  %1138 = vmatpush.msra.mxu0 %v1071
  %1139 = vmatpush.msra.mxu0 %v1070
  %1140 = vmatpush.msra.mxu0 %v1069
  %1141 = vmatpush.msra.mxu0 %v1068
  %1142 = vmatmul.f32.gmra.mxu0 %v1075
  %v1143 = vpop.f32.mrf.mxu0
  %v1144 = vadd.f32 0.0, %v1143
  %1145 = vmatmul.f32.gmra.mxu0 %v1078
  %v1146 = vpop.f32.mrf.mxu0
  %v1147 = vadd.f32 0.0, %v1146
  %1148 = vmatmul.f32.gmra.mxu0 %v1081
  %v1149 = vpop.f32.mrf.mxu0
  %v1150 = vadd.f32 0.0, %v1149
  %1151 = vmatmul.f32.gmra.mxu0 %v1084
  %v1152 = vpop.f32.mrf.mxu0
  %v1153 = vadd.f32 0.0, %v1152
  %1154 = vmatmul.f32.gmra.mxu0 %v1087
  %v1155 = vpop.f32.mrf.mxu0
  %v1156 = vadd.f32 0.0, %v1155
  %1157 = vmatmul.f32.gmra.mxu0 %v1090
  %v1158 = vpop.f32.mrf.mxu0
  %v1159 = vadd.f32 0.0, %v1158
  %1160 = vmatmul.f32.gmra.mxu0 %v1093
  %v1161 = vpop.f32.mrf.mxu0
  %v1162 = vadd.f32 0.0, %v1161
  %1163 = vmatmul.f32.gmra.mxu0 %v1096
  %v1164 = vpop.f32.mrf.mxu0
  %v1165 = vadd.f32 0.0, %v1164
  %1166 = vmatmul.f32.gmra.mxu0 %v1099
  %v1167 = vpop.f32.mrf.mxu0
  %v1168 = vadd.f32 0.0, %v1167
  %1169 = vmatmul.f32.gmra.mxu0 %v1102
  %v1170 = vpop.f32.mrf.mxu0
  %v1171 = vadd.f32 0.0, %v1170
  %1172 = vmatmul.f32.gmra.mxu0 %v1105
  %v1173 = vpop.f32.mrf.mxu0
  %v1174 = vadd.f32 0.0, %v1173
  %1175 = vmatmul.f32.gmra.mxu0 %v1108
  %v1176 = vpop.f32.mrf.mxu0
  %v1177 = vadd.f32 0.0, %v1176
  %1178 = vmatmul.f32.gmra.mxu0 %v1111
  %v1179 = vpop.f32.mrf.mxu0
  %v1180 = vadd.f32 0.0, %v1179
  %1181 = vmatmul.f32.gmra.mxu0 %v1114
  %v1182 = vpop.f32.mrf.mxu0
  %v1183 = vadd.f32 0.0, %v1182
  %1184 = vmatmul.f32.gmra.mxu0 %v1117
  %v1185 = vpop.f32.mrf.mxu0
  %v1186 = vadd.f32 0.0, %v1185
  %1187 = vmatmul.f32.gmra.mxu0 %v1120
  %v1188 = vpop.f32.mrf.mxu0
  %v1189 = vadd.f32 0.0, %v1188
  %1190 = vdwg.mxu0
  %v1191 = vsel %vm949, %v1144, 0.0
  %v1192 = vsel %vm949, %v1147, 0.0
  %v1193 = vadd.f32 %v1191, %v1192
  %v1194 = vsel %vm949, %v1150, 0.0
  %v1195 = vadd.f32 %v1193, %v1194
  %v1196 = vsel %vm949, %v1153, 0.0
  %v1197 = vadd.f32 %v1195, %v1196
  %v1198 = vsel %vm949, %v1156, 0.0
  %v1199 = vadd.f32 %v1197, %v1198
  %v1200 = vsel %vm949, %v1159, 0.0
  %v1201 = vadd.f32 %v1199, %v1200
  %v1202 = vsel %vm949, %v1162, 0.0
  %v1203 = vadd.f32 %v1201, %v1202
  %v1204 = vsel %vm949, %v1165, 0.0
  %v1205 = vadd.f32 %v1203, %v1204
  %v1206 = vsel %vm949, %v1168, 0.0
  %v1207 = vadd.f32 %v1205, %v1206
  %v1208 = vsel %vm949, %v1171, 0.0
  %v1209 = vadd.f32 %v1207, %v1208
  %v1210 = vsel %vm949, %v1174, 0.0
  %v1211 = vadd.f32 %v1209, %v1210
  %v1212 = vsel %vm949, %v1177, 0.0
  %v1213 = vadd.f32 %v1211, %v1212
  %v1214 = vsel %vm949, %v1180, 0.0
  %v1215 = vadd.f32 %v1213, %v1214
  %v1216 = vsel %vm949, %v1183, 0.0
  %v1217 = vadd.f32 %v1215, %v1216
  %v1218 = vsel %vm949, %v1186, 0.0
  %v1219 = vadd.f32 %v1217, %v1218
  %v1220 = vsel %vm949, %v1189, 0.0
  %v1221 = vadd.f32 %v1219, %v1220
  %v1222 = vrot.slane %v1221, 4
  %v1223 = vadd.f32 %v1221, %v1222
  %v1224 = vrot.slane %v1223, 2
  %v1225 = vadd.f32 %v1223, %v1224
  %v1226 = vrot.slane %v1225, 1
  %v1227 = vadd.f32 %v1225, %v1226
  %v1228 = vrcp.pop 128.0
  %v1229 = vmul.f32 128.0, %v1228
  %v1230 = vsub.f32 1.0, %v1229
  %v1231 = vmul.f32 %v1228, %v1230
  %v1232 = vadd.f32 %v1228, %v1231
  %vm1233 = vweird.f32 %v1228
  %v1234 = vsel %vm1233, %v1228, %v1232
  %v1235 = vmul.f32 %v1227, %v1234
  %v1236 = vsub.f32 %v1144, %v1235
  %v1237 = vsub.f32 %v1147, %v1235
  %v1238 = vsub.f32 %v1150, %v1235
  %v1239 = vsub.f32 %v1153, %v1235
  %v1240 = vsub.f32 %v1156, %v1235
  %v1241 = vsub.f32 %v1159, %v1235
  %v1242 = vsub.f32 %v1162, %v1235
  %v1243 = vsub.f32 %v1165, %v1235
  %v1244 = vsub.f32 %v1168, %v1235
  %v1245 = vsub.f32 %v1171, %v1235
  %v1246 = vsub.f32 %v1174, %v1235
  %v1247 = vsub.f32 %v1177, %v1235
  %v1248 = vsub.f32 %v1180, %v1235
  %v1249 = vsub.f32 %v1183, %v1235
  %v1250 = vsub.f32 %v1186, %v1235
  %v1251 = vsub.f32 %v1189, %v1235
  %v1252 = vmul.f32 %v1236, %v1236
  %v1253 = vmul.f32 %v1237, %v1237
  %v1254 = vmul.f32 %v1238, %v1238
  %v1255 = vmul.f32 %v1239, %v1239
  %v1256 = vmul.f32 %v1240, %v1240
  %v1257 = vmul.f32 %v1241, %v1241
  %v1258 = vmul.f32 %v1242, %v1242
  %v1259 = vmul.f32 %v1243, %v1243
  %v1260 = vmul.f32 %v1244, %v1244
  %v1261 = vmul.f32 %v1245, %v1245
  %v1262 = vmul.f32 %v1246, %v1246
  %v1263 = vmul.f32 %v1247, %v1247
  %v1264 = vmul.f32 %v1248, %v1248
  %v1265 = vmul.f32 %v1249, %v1249
  %v1266 = vmul.f32 %v1250, %v1250
  %v1267 = vmul.f32 %v1251, %v1251
  %v1268 = vsel %vm949, %v1252, 0.0
  %v1269 = vsel %vm949, %v1253, 0.0
  %v1270 = vadd.f32 %v1268, %v1269
  %v1271 = vsel %vm949, %v1254, 0.0
  %v1272 = vadd.f32 %v1270, %v1271
  %v1273 = vsel %vm949, %v1255, 0.0
  %v1274 = vadd.f32 %v1272, %v1273
  %v1275 = vsel %vm949, %v1256, 0.0
  %v1276 = vadd.f32 %v1274, %v1275
  %v1277 = vsel %vm949, %v1257, 0.0
  %v1278 = vadd.f32 %v1276, %v1277
  %v1279 = vsel %vm949, %v1258, 0.0
  %v1280 = vadd.f32 %v1278, %v1279
  %v1281 = vsel %vm949, %v1259, 0.0
  %v1282 = vadd.f32 %v1280, %v1281
  %v1283 = vsel %vm949, %v1260, 0.0
  %v1284 = vadd.f32 %v1282, %v1283
  %v1285 = vsel %vm949, %v1261, 0.0
  %v1286 = vadd.f32 %v1284, %v1285
  %v1287 = vsel %vm949, %v1262, 0.0
  %v1288 = vadd.f32 %v1286, %v1287
  %v1289 = vsel %vm949, %v1263, 0.0
  %v1290 = vadd.f32 %v1288, %v1289
  %v1291 = vsel %vm949, %v1264, 0.0
  %v1292 = vadd.f32 %v1290, %v1291
  %v1293 = vsel %vm949, %v1265, 0.0
  %v1294 = vadd.f32 %v1292, %v1293
  %v1295 = vsel %vm949, %v1266, 0.0
  %v1296 = vadd.f32 %v1294, %v1295
  %v1297 = vsel %vm949, %v1267, 0.0
  %v1298 = vadd.f32 %v1296, %v1297
  %v1299 = vrot.slane %v1298, 4
  %v1300 = vadd.f32 %v1298, %v1299
  %v1301 = vrot.slane %v1300, 2
  %v1302 = vadd.f32 %v1300, %v1301
  %v1303 = vrot.slane %v1302, 1
  %v1304 = vadd.f32 %v1302, %v1303
  %v1305 = vmul.f32 %v1304, %v1234
  %v1306 = vld [vmem:[%s2] sm:$0x1]
  %v1307 = vadd.f32 %v1235, %v1306
  %v1308 = vld [vmem:[%s3] sm:$0x1]
  %v1309 = vadd.f32 %v1305, 1e-05
  %v1310 = vrsqrt.pop %v1309
  %v1311 = vmul.f32 %v1310, %v1309
  %v1312 = vmul.f32 %v1311, %v1310
  %v1313 = vmul.f32 0.5, %v1312
  %v1314 = vsub.f32 1.5, %v1313
  %v1315 = vmul.f32 %v1310, %v1314
  %vm1316 = vweird.f32 %v1309
  %vm1317 = vweird.f32 %v1310
  %vm1318 = vmor %vm1316, %vm1317
  %v1319 = vsel %vm1318, %v1310, %v1315
  %v1320 = vmul.f32 %v1308, %v1319
  %v1321 = vld [vmem:[%s4] sm:$0x1]
  %v1322 = vsub.f32 %v1306, %v1307
  %v1323 = vmul.f32 %v1322, %v1320
  %v1324 = vadd.f32 %v1321, %v1323
  %v1326 = vperm.slane %v1320, 0
  %v1328 = vmul.f32 %v1144, %v1326
  %v1329 = vmul.f32 %v1147, %v1326
  %v1330 = vmul.f32 %v1150, %v1326
  %v1331 = vmul.f32 %v1153, %v1326
  %v1332 = vmul.f32 %v1156, %v1326
  %v1333 = vmul.f32 %v1159, %v1326
  %v1334 = vmul.f32 %v1162, %v1326
  %v1335 = vmul.f32 %v1165, %v1326
  %v1336 = vmul.f32 %v1168, %v1326
  %v1337 = vmul.f32 %v1171, %v1326
  %v1338 = vmul.f32 %v1174, %v1326
  %v1339 = vmul.f32 %v1177, %v1326
  %v1340 = vmul.f32 %v1180, %v1326
  %v1341 = vmul.f32 %v1183, %v1326
  %v1342 = vmul.f32 %v1186, %v1326
  %v1343 = vmul.f32 %v1189, %v1326
  %v1345 = vperm.slane %v1324, 0
  %v1347 = vadd.f32 %v1328, %v1345
  %v1348 = vadd.f32 %v1329, %v1345
  %v1349 = vadd.f32 %v1330, %v1345
  %v1350 = vadd.f32 %v1331, %v1345
  %v1351 = vadd.f32 %v1332, %v1345
  %v1352 = vadd.f32 %v1333, %v1345
  %v1353 = vadd.f32 %v1334, %v1345
  %v1354 = vadd.f32 %v1335, %v1345
  %v1355 = vadd.f32 %v1336, %v1345
  %v1356 = vadd.f32 %v1337, %v1345
  %v1357 = vadd.f32 %v1338, %v1345
  %v1358 = vadd.f32 %v1339, %v1345
  %v1359 = vadd.f32 %v1340, %v1345
  %v1360 = vadd.f32 %v1341, %v1345
  %v1361 = vadd.f32 %v1342, %v1345
  %v1362 = vadd.f32 %v1343, %v1345
  %v1363 = vmax.f32 %v1347, 0.0
  %v1364 = vmax.f32 %v1348, 0.0
  %v1365 = vmax.f32 %v1349, 0.0
  %v1366 = vmax.f32 %v1350, 0.0
  %v1367 = vmax.f32 %v1351, 0.0
  %v1368 = vmax.f32 %v1352, 0.0
  %v1369 = vmax.f32 %v1353, 0.0
  %v1370 = vmax.f32 %v1354, 0.0
  %v1371 = vmax.f32 %v1355, 0.0
  %v1372 = vmax.f32 %v1356, 0.0
  %v1373 = vmax.f32 %v1357, 0.0
  %v1374 = vmax.f32 %v1358, 0.0
  %v1375 = vmax.f32 %v1359, 0.0
  %v1376 = vmax.f32 %v1360, 0.0
  %v1377 = vmax.f32 %v1361, 0.0
  %v1378 = vmax.f32 %v1362, 0.0
  %1379 = vst.msk [vmem:[#allocation3] sm:$0xff] %vm949, 0.0
  %vm1380 = vcmask 58368
  %1381 = vst.msk [vmem:[#allocation3 + $0x8] sm:$0x3] %vm1380, 0.0
  %1382 = vst.msk [vmem:[#allocation3 + $0xa0] sm:$0xff] %vm949, 0.0
  %1383 = vst.msk [vmem:[#allocation3 + $0xa8] sm:$0x3] %vm1380, 0.0
  %s1384 = scalar_lea.vmem [#allocation3], 144
  %1385 = vst.msk [vmem:[%s1384] sm:$0xff] %vm949, 0.0
  %1386 = vst.msk [vmem:[%s1384 + $0x8] sm:$0x3] %vm1380, 0.0
  %1387 = vst.msk [vmem:[%s1384 + $0xa0] sm:$0xff] %vm949, 0.0
  %1388 = vst.msk [vmem:[%s1384 + $0xa8] sm:$0x3] %vm1380, 0.0
  %vm1389 = vcmask 57344
  %1390 = vst.msk [vmem:[#allocation3] sm:$0x1] %vm1389, 0.0
  %1391 = vst.msk [vmem:[#allocation3 + $0x10] sm:$0x1] %vm1389, 0.0
  %1392 = vst.msk [vmem:[#allocation3 + $0x20] sm:$0x1] %vm1389, 0.0
  %1393 = vst.msk [vmem:[#allocation3 + $0x30] sm:$0x1] %vm1389, 0.0
  %1394 = vst.msk [vmem:[#allocation3 + $0x40] sm:$0x1] %vm1389, 0.0
  %1395 = vst.msk [vmem:[#allocation3 + $0x50] sm:$0x1] %vm1389, 0.0
  %1396 = vst.msk [vmem:[#allocation3 + $0x60] sm:$0x1] %vm1389, 0.0
  %1397 = vst.msk [vmem:[#allocation3 + $0x70] sm:$0x1] %vm1389, 0.0
  %1398 = vst.msk [vmem:[#allocation3 + $0x80] sm:$0x1] %vm1389, 0.0
  %1399 = vst.msk [vmem:[#allocation3 + $0x90] sm:$0x1] %vm1389, 0.0
  %1400 = vst.msk [vmem:[#allocation3 + $0xa0] sm:$0x1] %vm1389, 0.0
  %1401 = vst.msk [vmem:[#allocation3 + $0xb0] sm:$0x1] %vm1389, 0.0
  %1402 = vst.msk [vmem:[#allocation3 + $0xc0] sm:$0x1] %vm1389, 0.0
  %1403 = vst.msk [vmem:[#allocation3 + $0xd0] sm:$0x1] %vm1389, 0.0
  %1404 = vst.msk [vmem:[#allocation3 + $0xe0] sm:$0x1] %vm1389, 0.0
  %1405 = vst.msk [vmem:[#allocation3 + $0xf0] sm:$0x1] %vm1389, 0.0
  %1406 = vst.msk [vmem:[#allocation3 + $0x100] sm:$0x1] %vm1389, 0.0
  %1407 = vst.msk [vmem:[#allocation3 + $0x110] sm:$0x1] %vm1389, 0.0
  %1408 = vst.msk [vmem:[#allocation3 + $0x120] sm:$0x1] %vm1389, 0.0
  %1409 = vst.msk [vmem:[#allocation3 + $0x130] sm:$0x1] %vm1389, 0.0
  %1410 = vst.msk [vmem:[#allocation3 + $0x9] sm:$0x1] %vm1389, 0.0
  %1411 = vst.msk [vmem:[#allocation3 + $0x19] sm:$0x1] %vm1389, 0.0
  %1412 = vst.msk [vmem:[#allocation3 + $0x29] sm:$0x1] %vm1389, 0.0
  %1413 = vst.msk [vmem:[#allocation3 + $0x39] sm:$0x1] %vm1389, 0.0
  %1414 = vst.msk [vmem:[#allocation3 + $0x49] sm:$0x1] %vm1389, 0.0
  %1415 = vst.msk [vmem:[#allocation3 + $0x59] sm:$0x1] %vm1389, 0.0
  %1416 = vst.msk [vmem:[#allocation3 + $0x69] sm:$0x1] %vm1389, 0.0
  %1417 = vst.msk [vmem:[#allocation3 + $0x79] sm:$0x1] %vm1389, 0.0
  %1418 = vst.msk [vmem:[#allocation3 + $0x89] sm:$0x1] %vm1389, 0.0
  %1419 = vst.msk [vmem:[#allocation3 + $0x99] sm:$0x1] %vm1389, 0.0
  %1420 = vst.msk [vmem:[#allocation3 + $0xa9] sm:$0x1] %vm1389, 0.0
  %1421 = vst.msk [vmem:[#allocation3 + $0xb9] sm:$0x1] %vm1389, 0.0
  %1422 = vst.msk [vmem:[#allocation3 + $0xc9] sm:$0x1] %vm1389, 0.0
  %1423 = vst.msk [vmem:[#allocation3 + $0xd9] sm:$0x1] %vm1389, 0.0
  %1424 = vst.msk [vmem:[#allocation3 + $0xe9] sm:$0x1] %vm1389, 0.0
  %1425 = vst.msk [vmem:[#allocation3 + $0xf9] sm:$0x1] %vm1389, 0.0
  %1426 = vst.msk [vmem:[#allocation3 + $0x109] sm:$0x1] %vm1389, 0.0
  %1427 = vst.msk [vmem:[#allocation3 + $0x119] sm:$0x1] %vm1389, 0.0
  %1428 = vst.msk [vmem:[#allocation3 + $0x129] sm:$0x1] %vm1389, 0.0
  %1429 = vst.msk [vmem:[#allocation3 + $0x139] sm:$0x1] %vm1389, 0.0
  %s1430 = scalar_lea.vmem [#allocation3], 16
  %1431 = vst.msk [vmem:[%s1430 + $0x1] sm:$0xff] %vm949, %v1363
  %1432 = vst.msk [vmem:[%s1430 + $0x11] sm:$0xff] %vm949, %v1364
  %1433 = vst.msk [vmem:[%s1430 + $0x21] sm:$0xff] %vm949, %v1365
  %1434 = vst.msk [vmem:[%s1430 + $0x31] sm:$0xff] %vm949, %v1366
  %1435 = vst.msk [vmem:[%s1430 + $0x41] sm:$0xff] %vm949, %v1367
  %1436 = vst.msk [vmem:[%s1430 + $0x51] sm:$0xff] %vm949, %v1368
  %1437 = vst.msk [vmem:[%s1430 + $0x61] sm:$0xff] %vm949, %v1369
  %1438 = vst.msk [vmem:[%s1430 + $0x71] sm:$0xff] %vm949, %v1370
  %1439 = vst.msk [vmem:[%s1430 + $0xa1] sm:$0xff] %vm949, %v1371
  %1440 = vst.msk [vmem:[%s1430 + $0xb1] sm:$0xff] %vm949, %v1372
  %1441 = vst.msk [vmem:[%s1430 + $0xc1] sm:$0xff] %vm949, %v1373
  %1442 = vst.msk [vmem:[%s1430 + $0xd1] sm:$0xff] %vm949, %v1374
  %1443 = vst.msk [vmem:[%s1430 + $0xe1] sm:$0xff] %vm949, %v1375
  %1444 = vst.msk [vmem:[%s1430 + $0xf1] sm:$0xff] %vm949, %v1376
  %1445 = vst.msk [vmem:[%s1430 + $0x101] sm:$0xff] %vm949, %v1377
  %1446 = vst.msk [vmem:[%s1430 + $0x111] sm:$0xff] %vm949, %v1378
  %v1447 = vld [vmem:[#allocation3] sm:$0xff]
  %v1448 = vld [vmem:[#allocation3 + $0x10] sm:$0xff]
  %v1449 = vld [vmem:[#allocation3 + $0x20] sm:$0xff]
  %v1450 = vld [vmem:[#allocation3 + $0x30] sm:$0xff]
  %v1451 = vld [vmem:[#allocation3 + $0x40] sm:$0xff]
  %v1452 = vld [vmem:[#allocation3 + $0x50] sm:$0xff]
  %v1453 = vld [vmem:[#allocation3 + $0x60] sm:$0xff]
  %v1454 = vld [vmem:[#allocation3 + $0x70] sm:$0xff]
  %v1455 = vld [vmem:[#allocation3 + $0xa0] sm:$0xff]
  %v1456 = vld [vmem:[#allocation3 + $0xb0] sm:$0xff]
  %v1457 = vld [vmem:[#allocation3 + $0xc0] sm:$0xff]
  %v1458 = vld [vmem:[#allocation3 + $0xd0] sm:$0xff]
  %v1459 = vld [vmem:[#allocation3 + $0xe0] sm:$0xff]
  %v1460 = vld [vmem:[#allocation3 + $0xf0] sm:$0xff]
  %v1461 = vld [vmem:[#allocation3 + $0x100] sm:$0xff]
  %v1462 = vld [vmem:[#allocation3 + $0x110] sm:$0xff]
  %v1463 = vld [vmem:[#allocation3 + $0x1] sm:$0xff]
  %v1464 = vld [vmem:[#allocation3 + $0x11] sm:$0xff]
  %v1465 = vld [vmem:[#allocation3 + $0x21] sm:$0xff]
  %v1466 = vld [vmem:[#allocation3 + $0x31] sm:$0xff]
  %v1467 = vld [vmem:[#allocation3 + $0x41] sm:$0xff]
  %v1468 = vld [vmem:[#allocation3 + $0x51] sm:$0xff]
  %v1469 = vld [vmem:[#allocation3 + $0x61] sm:$0xff]
  %v1470 = vld [vmem:[#allocation3 + $0x71] sm:$0xff]
  %v1471 = vld [vmem:[#allocation3 + $0xa1] sm:$0xff]
  %v1472 = vld [vmem:[#allocation3 + $0xb1] sm:$0xff]
  %v1473 = vld [vmem:[#allocation3 + $0xc1] sm:$0xff]
  %v1474 = vld [vmem:[#allocation3 + $0xd1] sm:$0xff]
  %v1475 = vld [vmem:[#allocation3 + $0xe1] sm:$0xff]
  %v1476 = vld [vmem:[#allocation3 + $0xf1] sm:$0xff]
  %v1477 = vld [vmem:[#allocation3 + $0x101] sm:$0xff]
  %v1478 = vld [vmem:[#allocation3 + $0x111] sm:$0xff]
  %v1479 = vld [vmem:[#allocation3 + $0x2] sm:$0xff]
  %v1480 = vld [vmem:[#allocation3 + $0x12] sm:$0xff]
  %v1481 = vld [vmem:[#allocation3 + $0x22] sm:$0xff]
  %v1482 = vld [vmem:[#allocation3 + $0x32] sm:$0xff]
  %v1483 = vld [vmem:[#allocation3 + $0x42] sm:$0xff]
  %v1484 = vld [vmem:[#allocation3 + $0x52] sm:$0xff]
  %v1485 = vld [vmem:[#allocation3 + $0x62] sm:$0xff]
  %v1486 = vld [vmem:[#allocation3 + $0x72] sm:$0xff]
  %v1487 = vld [vmem:[#allocation3 + $0xa2] sm:$0xff]
  %v1488 = vld [vmem:[#allocation3 + $0xb2] sm:$0xff]
  %v1489 = vld [vmem:[#allocation3 + $0xc2] sm:$0xff]
  %v1490 = vld [vmem:[#allocation3 + $0xd2] sm:$0xff]
  %v1491 = vld [vmem:[#allocation3 + $0xe2] sm:$0xff]
  %v1492 = vld [vmem:[#allocation3 + $0xf2] sm:$0xff]
  %v1493 = vld [vmem:[#allocation3 + $0x102] sm:$0xff]
  %v1494 = vld [vmem:[#allocation3 + $0x112] sm:$0xff]
  %v1495 = vld [vmem:[%s1430] sm:$0xff]
  %v1496 = vld [vmem:[%s1430 + $0x10] sm:$0xff]
  %v1497 = vld [vmem:[%s1430 + $0x20] sm:$0xff]
  %v1498 = vld [vmem:[%s1430 + $0x30] sm:$0xff]
  %v1499 = vld [vmem:[%s1430 + $0x40] sm:$0xff]
  %v1500 = vld [vmem:[%s1430 + $0x50] sm:$0xff]
  %v1501 = vld [vmem:[%s1430 + $0x60] sm:$0xff]
  %v1502 = vld [vmem:[%s1430 + $0x70] sm:$0xff]
  %v1503 = vld [vmem:[%s1430 + $0xa0] sm:$0xff]
  %v1504 = vld [vmem:[%s1430 + $0xb0] sm:$0xff]
  %v1505 = vld [vmem:[%s1430 + $0xc0] sm:$0xff]
  %v1506 = vld [vmem:[%s1430 + $0xd0] sm:$0xff]
  %v1507 = vld [vmem:[%s1430 + $0xe0] sm:$0xff]
  %v1508 = vld [vmem:[%s1430 + $0xf0] sm:$0xff]
  %v1509 = vld [vmem:[%s1430 + $0x100] sm:$0xff]
  %v1510 = vld [vmem:[%s1430 + $0x110] sm:$0xff]
  %v1511 = vld [vmem:[%s1430 + $0x1] sm:$0xff]
  %v1512 = vld [vmem:[%s1430 + $0x11] sm:$0xff]
  %v1513 = vld [vmem:[%s1430 + $0x21] sm:$0xff]
  %v1514 = vld [vmem:[%s1430 + $0x31] sm:$0xff]
  %v1515 = vld [vmem:[%s1430 + $0x41] sm:$0xff]
  %v1516 = vld [vmem:[%s1430 + $0x51] sm:$0xff]
  %v1517 = vld [vmem:[%s1430 + $0x61] sm:$0xff]
  %v1518 = vld [vmem:[%s1430 + $0x71] sm:$0xff]
  %v1519 = vld [vmem:[%s1430 + $0xa1] sm:$0xff]
  %v1520 = vld [vmem:[%s1430 + $0xb1] sm:$0xff]
  %v1521 = vld [vmem:[%s1430 + $0xc1] sm:$0xff]
  %v1522 = vld [vmem:[%s1430 + $0xd1] sm:$0xff]
  %v1523 = vld [vmem:[%s1430 + $0xe1] sm:$0xff]
  %v1524 = vld [vmem:[%s1430 + $0xf1] sm:$0xff]
  %v1525 = vld [vmem:[%s1430 + $0x101] sm:$0xff]
  %v1526 = vld [vmem:[%s1430 + $0x111] sm:$0xff]
  %v1527 = vld [vmem:[%s1430 + $0x2] sm:$0xff]
  %v1528 = vld [vmem:[%s1430 + $0x12] sm:$0xff]
  %v1529 = vld [vmem:[%s1430 + $0x22] sm:$0xff]
  %v1530 = vld [vmem:[%s1430 + $0x32] sm:$0xff]
  %v1531 = vld [vmem:[%s1430 + $0x42] sm:$0xff]
  %v1532 = vld [vmem:[%s1430 + $0x52] sm:$0xff]
  %v1533 = vld [vmem:[%s1430 + $0x62] sm:$0xff]
  %v1534 = vld [vmem:[%s1430 + $0x72] sm:$0xff]
  %v1535 = vld [vmem:[%s1430 + $0xa2] sm:$0xff]
  %v1536 = vld [vmem:[%s1430 + $0xb2] sm:$0xff]
  %v1537 = vld [vmem:[%s1430 + $0xc2] sm:$0xff]
  %v1538 = vld [vmem:[%s1430 + $0xd2] sm:$0xff]
  %v1539 = vld [vmem:[%s1430 + $0xe2] sm:$0xff]
  %v1540 = vld [vmem:[%s1430 + $0xf2] sm:$0xff]
  %v1541 = vld [vmem:[%s1430 + $0x102] sm:$0xff]
  %v1542 = vld [vmem:[%s1430 + $0x112] sm:$0xff]
  %s1543 = scalar_lea.vmem [#allocation3], 32
  %v1544 = vld [vmem:[%s1543] sm:$0xff]
  %v1545 = vld [vmem:[%s1543 + $0x10] sm:$0xff]
  %v1546 = vld [vmem:[%s1543 + $0x20] sm:$0xff]
  %v1547 = vld [vmem:[%s1543 + $0x30] sm:$0xff]
  %v1548 = vld [vmem:[%s1543 + $0x40] sm:$0xff]
  %v1549 = vld [vmem:[%s1543 + $0x50] sm:$0xff]
  %v1550 = vld [vmem:[%s1543 + $0x60] sm:$0xff]
  %v1551 = vld [vmem:[%s1543 + $0x70] sm:$0xff]
  %v1552 = vld [vmem:[%s1543 + $0xa0] sm:$0xff]
  %v1553 = vld [vmem:[%s1543 + $0xb0] sm:$0xff]
  %v1554 = vld [vmem:[%s1543 + $0xc0] sm:$0xff]
  %v1555 = vld [vmem:[%s1543 + $0xd0] sm:$0xff]
  %v1556 = vld [vmem:[%s1543 + $0xe0] sm:$0xff]
  %v1557 = vld [vmem:[%s1543 + $0xf0] sm:$0xff]
  %v1558 = vld [vmem:[%s1543 + $0x100] sm:$0xff]
  %v1559 = vld [vmem:[%s1543 + $0x110] sm:$0xff]
  %v1560 = vld [vmem:[%s1543 + $0x1] sm:$0xff]
  %v1561 = vld [vmem:[%s1543 + $0x11] sm:$0xff]
  %v1562 = vld [vmem:[%s1543 + $0x21] sm:$0xff]
  %v1563 = vld [vmem:[%s1543 + $0x31] sm:$0xff]
  %v1564 = vld [vmem:[%s1543 + $0x41] sm:$0xff]
  %v1565 = vld [vmem:[%s1543 + $0x51] sm:$0xff]
  %v1566 = vld [vmem:[%s1543 + $0x61] sm:$0xff]
  %v1567 = vld [vmem:[%s1543 + $0x71] sm:$0xff]
  %v1568 = vld [vmem:[%s1543 + $0xa1] sm:$0xff]
  %v1569 = vld [vmem:[%s1543 + $0xb1] sm:$0xff]
  %v1570 = vld [vmem:[%s1543 + $0xc1] sm:$0xff]
  %v1571 = vld [vmem:[%s1543 + $0xd1] sm:$0xff]
  %v1572 = vld [vmem:[%s1543 + $0xe1] sm:$0xff]
  %v1573 = vld [vmem:[%s1543 + $0xf1] sm:$0xff]
  %v1574 = vld [vmem:[%s1543 + $0x101] sm:$0xff]
  %v1575 = vld [vmem:[%s1543 + $0x111] sm:$0xff]
  %v1576 = vld [vmem:[%s1543 + $0x2] sm:$0xff]
  %v1577 = vld [vmem:[%s1543 + $0x12] sm:$0xff]
  %v1578 = vld [vmem:[%s1543 + $0x22] sm:$0xff]
  %v1579 = vld [vmem:[%s1543 + $0x32] sm:$0xff]
  %v1580 = vld [vmem:[%s1543 + $0x42] sm:$0xff]
  %v1581 = vld [vmem:[%s1543 + $0x52] sm:$0xff]
  %v1582 = vld [vmem:[%s1543 + $0x62] sm:$0xff]
  %v1583 = vld [vmem:[%s1543 + $0x72] sm:$0xff]
  %v1584 = vld [vmem:[%s1543 + $0xa2] sm:$0xff]
  %v1585 = vld [vmem:[%s1543 + $0xb2] sm:$0xff]
  %v1586 = vld [vmem:[%s1543 + $0xc2] sm:$0xff]
  %v1587 = vld [vmem:[%s1543 + $0xd2] sm:$0xff]
  %v1588 = vld [vmem:[%s1543 + $0xe2] sm:$0xff]
  %v1589 = vld [vmem:[%s1543 + $0xf2] sm:$0xff]
  %v1590 = vld [vmem:[%s1543 + $0x102] sm:$0xff]
  %v1591 = vld [vmem:[%s1543 + $0x112] sm:$0xff]
  %1608 = vrot.lane.b32.xlu0 %v1463, 8
  %v1609 = vpop.permute.xlu0 %1608
  %1610 = vrot.lane.b32.xlu0 %v1464, 8
  %v1611 = vpop.permute.xlu0 %1610
  %1612 = vrot.lane.b32.xlu0 %v1465, 8
  %v1613 = vpop.permute.xlu0 %1612
  %1614 = vrot.lane.b32.xlu0 %v1466, 8
  %v1615 = vpop.permute.xlu0 %1614
  %1616 = vrot.lane.b32.xlu0 %v1467, 8
  %v1617 = vpop.permute.xlu0 %1616
  %1618 = vrot.lane.b32.xlu0 %v1468, 8
  %v1619 = vpop.permute.xlu0 %1618
  %1620 = vrot.lane.b32.xlu0 %v1469, 8
  %v1621 = vpop.permute.xlu0 %1620
  %1622 = vrot.lane.b32.xlu0 %v1470, 8
  %v1623 = vpop.permute.xlu0 %1622
  %1624 = vrot.lane.b32.xlu0 %v1471, 8
  %v1625 = vpop.permute.xlu0 %1624
  %1626 = vrot.lane.b32.xlu0 %v1472, 8
  %v1627 = vpop.permute.xlu0 %1626
  %1628 = vrot.lane.b32.xlu0 %v1473, 8
  %v1629 = vpop.permute.xlu0 %1628
  %1630 = vrot.lane.b32.xlu0 %v1474, 8
  %v1631 = vpop.permute.xlu0 %1630
  %1632 = vrot.lane.b32.xlu0 %v1475, 8
  %v1633 = vpop.permute.xlu0 %1632
  %1634 = vrot.lane.b32.xlu0 %v1476, 8
  %v1635 = vpop.permute.xlu0 %1634
  %1636 = vrot.lane.b32.xlu0 %v1477, 8
  %v1637 = vpop.permute.xlu0 %1636
  %1638 = vrot.lane.b32.xlu0 %v1478, 8
  %v1639 = vpop.permute.xlu0 %1638
  %1672 = vrot.lane.b32.xlu0 %v1479, 16
  %v1673 = vpop.permute.xlu0 %1672
  %1674 = vrot.lane.b32.xlu0 %v1480, 16
  %v1675 = vpop.permute.xlu0 %1674
  %1676 = vrot.lane.b32.xlu0 %v1481, 16
  %v1677 = vpop.permute.xlu0 %1676
  %1678 = vrot.lane.b32.xlu0 %v1482, 16
  %v1679 = vpop.permute.xlu0 %1678
  %1680 = vrot.lane.b32.xlu0 %v1483, 16
  %v1681 = vpop.permute.xlu0 %1680
  %1682 = vrot.lane.b32.xlu0 %v1484, 16
  %v1683 = vpop.permute.xlu0 %1682
  %1684 = vrot.lane.b32.xlu0 %v1485, 16
  %v1685 = vpop.permute.xlu0 %1684
  %1686 = vrot.lane.b32.xlu0 %v1486, 16
  %v1687 = vpop.permute.xlu0 %1686
  %1688 = vrot.lane.b32.xlu0 %v1487, 16
  %v1689 = vpop.permute.xlu0 %1688
  %1690 = vrot.lane.b32.xlu0 %v1488, 16
  %v1691 = vpop.permute.xlu0 %1690
  %1692 = vrot.lane.b32.xlu0 %v1489, 16
  %v1693 = vpop.permute.xlu0 %1692
  %1694 = vrot.lane.b32.xlu0 %v1490, 16
  %v1695 = vpop.permute.xlu0 %1694
  %1696 = vrot.lane.b32.xlu0 %v1491, 16
  %v1697 = vpop.permute.xlu0 %1696
  %1698 = vrot.lane.b32.xlu0 %v1492, 16
  %v1699 = vpop.permute.xlu0 %1698
  %1700 = vrot.lane.b32.xlu0 %v1493, 16
  %v1701 = vpop.permute.xlu0 %1700
  %1702 = vrot.lane.b32.xlu0 %v1494, 16
  %v1703 = vpop.permute.xlu0 %1702
  %1736 = vrot.lane.b32.xlu0 %v1495, 24
  %v1737 = vpop.permute.xlu0 %1736
  %1738 = vrot.lane.b32.xlu0 %v1496, 24
  %v1739 = vpop.permute.xlu0 %1738
  %1740 = vrot.lane.b32.xlu0 %v1497, 24
  %v1741 = vpop.permute.xlu0 %1740
  %1742 = vrot.lane.b32.xlu0 %v1498, 24
  %v1743 = vpop.permute.xlu0 %1742
  %1744 = vrot.lane.b32.xlu0 %v1499, 24
  %v1745 = vpop.permute.xlu0 %1744
  %1746 = vrot.lane.b32.xlu0 %v1500, 24
  %v1747 = vpop.permute.xlu0 %1746
  %1748 = vrot.lane.b32.xlu0 %v1501, 24
  %v1749 = vpop.permute.xlu0 %1748
  %1750 = vrot.lane.b32.xlu0 %v1502, 24
  %v1751 = vpop.permute.xlu0 %1750
  %1752 = vrot.lane.b32.xlu0 %v1503, 24
  %v1753 = vpop.permute.xlu0 %1752
  %1754 = vrot.lane.b32.xlu0 %v1504, 24
  %v1755 = vpop.permute.xlu0 %1754
  %1756 = vrot.lane.b32.xlu0 %v1505, 24
  %v1757 = vpop.permute.xlu0 %1756
  %1758 = vrot.lane.b32.xlu0 %v1506, 24
  %v1759 = vpop.permute.xlu0 %1758
  %1760 = vrot.lane.b32.xlu0 %v1507, 24
  %v1761 = vpop.permute.xlu0 %1760
  %1762 = vrot.lane.b32.xlu0 %v1508, 24
  %v1763 = vpop.permute.xlu0 %1762
  %1764 = vrot.lane.b32.xlu0 %v1509, 24
  %v1765 = vpop.permute.xlu0 %1764
  %1766 = vrot.lane.b32.xlu0 %v1510, 24
  %v1767 = vpop.permute.xlu0 %1766
  %1800 = vrot.lane.b32.xlu0 %v1511, 32
  %v1801 = vpop.permute.xlu0 %1800
  %1802 = vrot.lane.b32.xlu0 %v1512, 32
  %v1803 = vpop.permute.xlu0 %1802
  %1804 = vrot.lane.b32.xlu0 %v1513, 32
  %v1805 = vpop.permute.xlu0 %1804
  %1806 = vrot.lane.b32.xlu0 %v1514, 32
  %v1807 = vpop.permute.xlu0 %1806
  %1808 = vrot.lane.b32.xlu0 %v1515, 32
  %v1809 = vpop.permute.xlu0 %1808
  %1810 = vrot.lane.b32.xlu0 %v1516, 32
  %v1811 = vpop.permute.xlu0 %1810
  %1812 = vrot.lane.b32.xlu0 %v1517, 32
  %v1813 = vpop.permute.xlu0 %1812
  %1814 = vrot.lane.b32.xlu0 %v1518, 32
  %v1815 = vpop.permute.xlu0 %1814
  %1816 = vrot.lane.b32.xlu0 %v1519, 32
  %v1817 = vpop.permute.xlu0 %1816
  %1818 = vrot.lane.b32.xlu0 %v1520, 32
  %v1819 = vpop.permute.xlu0 %1818
  %1820 = vrot.lane.b32.xlu0 %v1521, 32
  %v1821 = vpop.permute.xlu0 %1820
  %1822 = vrot.lane.b32.xlu0 %v1522, 32
  %v1823 = vpop.permute.xlu0 %1822
  %1824 = vrot.lane.b32.xlu0 %v1523, 32
  %v1825 = vpop.permute.xlu0 %1824
  %1826 = vrot.lane.b32.xlu0 %v1524, 32
  %v1827 = vpop.permute.xlu0 %1826
  %1828 = vrot.lane.b32.xlu0 %v1525, 32
  %v1829 = vpop.permute.xlu0 %1828
  %1830 = vrot.lane.b32.xlu0 %v1526, 32
  %v1831 = vpop.permute.xlu0 %1830
  %1864 = vrot.lane.b32.xlu0 %v1527, 40
  %v1865 = vpop.permute.xlu0 %1864
  %1866 = vrot.lane.b32.xlu0 %v1528, 40
  %v1867 = vpop.permute.xlu0 %1866
  %1868 = vrot.lane.b32.xlu0 %v1529, 40
  %v1869 = vpop.permute.xlu0 %1868
  %1870 = vrot.lane.b32.xlu0 %v1530, 40
  %v1871 = vpop.permute.xlu0 %1870
  %1872 = vrot.lane.b32.xlu0 %v1531, 40
  %v1873 = vpop.permute.xlu0 %1872
  %1874 = vrot.lane.b32.xlu0 %v1532, 40
  %v1875 = vpop.permute.xlu0 %1874
  %1876 = vrot.lane.b32.xlu0 %v1533, 40
  %v1877 = vpop.permute.xlu0 %1876
  %1878 = vrot.lane.b32.xlu0 %v1534, 40
  %v1879 = vpop.permute.xlu0 %1878
  %1880 = vrot.lane.b32.xlu0 %v1535, 40
  %v1881 = vpop.permute.xlu0 %1880
  %1882 = vrot.lane.b32.xlu0 %v1536, 40
  %v1883 = vpop.permute.xlu0 %1882
  %1884 = vrot.lane.b32.xlu0 %v1537, 40
  %v1885 = vpop.permute.xlu0 %1884
  %1886 = vrot.lane.b32.xlu0 %v1538, 40
  %v1887 = vpop.permute.xlu0 %1886
  %1888 = vrot.lane.b32.xlu0 %v1539, 40
  %v1889 = vpop.permute.xlu0 %1888
  %1890 = vrot.lane.b32.xlu0 %v1540, 40
  %v1891 = vpop.permute.xlu0 %1890
  %1892 = vrot.lane.b32.xlu0 %v1541, 40
  %v1893 = vpop.permute.xlu0 %1892
  %1894 = vrot.lane.b32.xlu0 %v1542, 40
  %v1895 = vpop.permute.xlu0 %1894
  %1928 = vrot.lane.b32.xlu0 %v1544, 48
  %v1929 = vpop.permute.xlu0 %1928
  %1930 = vrot.lane.b32.xlu0 %v1545, 48
  %v1931 = vpop.permute.xlu0 %1930
  %1932 = vrot.lane.b32.xlu0 %v1546, 48
  %v1933 = vpop.permute.xlu0 %1932
  %1934 = vrot.lane.b32.xlu0 %v1547, 48
  %v1935 = vpop.permute.xlu0 %1934
  %1936 = vrot.lane.b32.xlu0 %v1548, 48
  %v1937 = vpop.permute.xlu0 %1936
  %1938 = vrot.lane.b32.xlu0 %v1549, 48
  %v1939 = vpop.permute.xlu0 %1938
  %1940 = vrot.lane.b32.xlu0 %v1550, 48
  %v1941 = vpop.permute.xlu0 %1940
  %1942 = vrot.lane.b32.xlu0 %v1551, 48
  %v1943 = vpop.permute.xlu0 %1942
  %1944 = vrot.lane.b32.xlu0 %v1552, 48
  %v1945 = vpop.permute.xlu0 %1944
  %1946 = vrot.lane.b32.xlu0 %v1553, 48
  %v1947 = vpop.permute.xlu0 %1946
  %1948 = vrot.lane.b32.xlu0 %v1554, 48
  %v1949 = vpop.permute.xlu0 %1948
  %1950 = vrot.lane.b32.xlu0 %v1555, 48
  %v1951 = vpop.permute.xlu0 %1950
  %1952 = vrot.lane.b32.xlu0 %v1556, 48
  %v1953 = vpop.permute.xlu0 %1952
  %1954 = vrot.lane.b32.xlu0 %v1557, 48
  %v1955 = vpop.permute.xlu0 %1954
  %1956 = vrot.lane.b32.xlu0 %v1558, 48
  %v1957 = vpop.permute.xlu0 %1956
  %1958 = vrot.lane.b32.xlu0 %v1559, 48
  %v1959 = vpop.permute.xlu0 %1958
  %1992 = vrot.lane.b32.xlu0 %v1560, 56
  %v1993 = vpop.permute.xlu0 %1992
  %1994 = vrot.lane.b32.xlu0 %v1561, 56
  %v1995 = vpop.permute.xlu0 %1994
  %1996 = vrot.lane.b32.xlu0 %v1562, 56
  %v1997 = vpop.permute.xlu0 %1996
  %1998 = vrot.lane.b32.xlu0 %v1563, 56
  %v1999 = vpop.permute.xlu0 %1998
  %2000 = vrot.lane.b32.xlu0 %v1564, 56
  %v2001 = vpop.permute.xlu0 %2000
  %2002 = vrot.lane.b32.xlu0 %v1565, 56
  %v2003 = vpop.permute.xlu0 %2002
  %2004 = vrot.lane.b32.xlu0 %v1566, 56
  %v2005 = vpop.permute.xlu0 %2004
  %2006 = vrot.lane.b32.xlu0 %v1567, 56
  %v2007 = vpop.permute.xlu0 %2006
  %2008 = vrot.lane.b32.xlu0 %v1568, 56
  %v2009 = vpop.permute.xlu0 %2008
  %2010 = vrot.lane.b32.xlu0 %v1569, 56
  %v2011 = vpop.permute.xlu0 %2010
  %2012 = vrot.lane.b32.xlu0 %v1570, 56
  %v2013 = vpop.permute.xlu0 %2012
  %2014 = vrot.lane.b32.xlu0 %v1571, 56
  %v2015 = vpop.permute.xlu0 %2014
  %2016 = vrot.lane.b32.xlu0 %v1572, 56
  %v2017 = vpop.permute.xlu0 %2016
  %2018 = vrot.lane.b32.xlu0 %v1573, 56
  %v2019 = vpop.permute.xlu0 %2018
  %2020 = vrot.lane.b32.xlu0 %v1574, 56
  %v2021 = vpop.permute.xlu0 %2020
  %2022 = vrot.lane.b32.xlu0 %v1575, 56
  %v2023 = vpop.permute.xlu0 %2022
  %2056 = vrot.lane.b32.xlu0 %v1576, 64
  %v2057 = vpop.permute.xlu0 %2056
  %2058 = vrot.lane.b32.xlu0 %v1577, 64
  %v2059 = vpop.permute.xlu0 %2058
  %2060 = vrot.lane.b32.xlu0 %v1578, 64
  %v2061 = vpop.permute.xlu0 %2060
  %2062 = vrot.lane.b32.xlu0 %v1579, 64
  %v2063 = vpop.permute.xlu0 %2062
  %2064 = vrot.lane.b32.xlu0 %v1580, 64
  %v2065 = vpop.permute.xlu0 %2064
  %2066 = vrot.lane.b32.xlu0 %v1581, 64
  %v2067 = vpop.permute.xlu0 %2066
  %2068 = vrot.lane.b32.xlu0 %v1582, 64
  %v2069 = vpop.permute.xlu0 %2068
  %2070 = vrot.lane.b32.xlu0 %v1583, 64
  %v2071 = vpop.permute.xlu0 %2070
  %2072 = vrot.lane.b32.xlu0 %v1584, 64
  %v2073 = vpop.permute.xlu0 %2072
  %2074 = vrot.lane.b32.xlu0 %v1585, 64
  %v2075 = vpop.permute.xlu0 %2074
  %2076 = vrot.lane.b32.xlu0 %v1586, 64
  %v2077 = vpop.permute.xlu0 %2076
  %2078 = vrot.lane.b32.xlu0 %v1587, 64
  %v2079 = vpop.permute.xlu0 %2078
  %2080 = vrot.lane.b32.xlu0 %v1588, 64
  %v2081 = vpop.permute.xlu0 %2080
  %2082 = vrot.lane.b32.xlu0 %v1589, 64
  %v2083 = vpop.permute.xlu0 %2082
  %2084 = vrot.lane.b32.xlu0 %v1590, 64
  %v2085 = vpop.permute.xlu0 %2084
  %2086 = vrot.lane.b32.xlu0 %v1591, 64
  %v2087 = vpop.permute.xlu0 %2086
  %v2104 = vsel %vm949, %v1447, %v1609
  %v2105 = vsel %vm949, %v1448, %v1611
  %v2106 = vsel %vm949, %v1449, %v1613
  %v2107 = vsel %vm949, %v1450, %v1615
  %v2108 = vsel %vm949, %v1451, %v1617
  %v2109 = vsel %vm949, %v1452, %v1619
  %v2110 = vsel %vm949, %v1453, %v1621
  %v2111 = vsel %vm949, %v1454, %v1623
  %v2112 = vsel %vm949, %v1455, %v1625
  %v2113 = vsel %vm949, %v1456, %v1627
  %v2114 = vsel %vm949, %v1457, %v1629
  %v2115 = vsel %vm949, %v1458, %v1631
  %v2116 = vsel %vm949, %v1459, %v1633
  %v2117 = vsel %vm949, %v1460, %v1635
  %v2118 = vsel %vm949, %v1461, %v1637
  %v2119 = vsel %vm949, %v1462, %v1639
  %v2120 = vsel %vm983, %v2104, %v1673
  %v2121 = vsel %vm983, %v2105, %v1675
  %v2122 = vsel %vm983, %v2106, %v1677
  %v2123 = vsel %vm983, %v2107, %v1679
  %v2124 = vsel %vm983, %v2108, %v1681
  %v2125 = vsel %vm983, %v2109, %v1683
  %v2126 = vsel %vm983, %v2110, %v1685
  %v2127 = vsel %vm983, %v2111, %v1687
  %v2128 = vsel %vm983, %v2112, %v1689
  %v2129 = vsel %vm983, %v2113, %v1691
  %v2130 = vsel %vm983, %v2114, %v1693
  %v2131 = vsel %vm983, %v2115, %v1695
  %v2132 = vsel %vm983, %v2116, %v1697
  %v2133 = vsel %vm983, %v2117, %v1699
  %v2134 = vsel %vm983, %v2118, %v1701
  %v2135 = vsel %vm983, %v2119, %v1703
  %v2136 = vsel %vm1017, %v2120, %v1737
  %v2137 = vsel %vm1017, %v2121, %v1739
  %v2138 = vsel %vm1017, %v2122, %v1741
  %v2139 = vsel %vm1017, %v2123, %v1743
  %v2140 = vsel %vm1017, %v2124, %v1745
  %v2141 = vsel %vm1017, %v2125, %v1747
  %v2142 = vsel %vm1017, %v2126, %v1749
  %v2143 = vsel %vm1017, %v2127, %v1751
  %v2144 = vsel %vm1017, %v2128, %v1753
  %v2145 = vsel %vm1017, %v2129, %v1755
  %v2146 = vsel %vm1017, %v2130, %v1757
  %v2147 = vsel %vm1017, %v2131, %v1759
  %v2148 = vsel %vm1017, %v2132, %v1761
  %v2149 = vsel %vm1017, %v2133, %v1763
  %v2150 = vsel %vm1017, %v2134, %v1765
  %v2151 = vsel %vm1017, %v2135, %v1767
  %v2152 = vsel %vm1051, %v2136, %v1801
  %v2153 = vsel %vm1051, %v2137, %v1803
  %v2154 = vsel %vm1051, %v2138, %v1805
  %v2155 = vsel %vm1051, %v2139, %v1807
  %v2156 = vsel %vm1051, %v2140, %v1809
  %v2157 = vsel %vm1051, %v2141, %v1811
  %v2158 = vsel %vm1051, %v2142, %v1813
  %v2159 = vsel %vm1051, %v2143, %v1815
  %v2160 = vsel %vm1051, %v2144, %v1817
  %v2161 = vsel %vm1051, %v2145, %v1819
  %v2162 = vsel %vm1051, %v2146, %v1821
  %v2163 = vsel %vm1051, %v2147, %v1823
  %v2164 = vsel %vm1051, %v2148, %v1825
  %v2165 = vsel %vm1051, %v2149, %v1827
  %v2166 = vsel %vm1051, %v2150, %v1829
  %v2167 = vsel %vm1051, %v2151, %v1831
  %vm2168 = vcmask 326656
  %v2169 = vsel %vm2168, %v2152, %v1865
  %v2170 = vsel %vm2168, %v2153, %v1867
  %v2171 = vsel %vm2168, %v2154, %v1869
  %v2172 = vsel %vm2168, %v2155, %v1871
  %v2173 = vsel %vm2168, %v2156, %v1873
  %v2174 = vsel %vm2168, %v2157, %v1875
  %v2175 = vsel %vm2168, %v2158, %v1877
  %v2176 = vsel %vm2168, %v2159, %v1879
  %v2177 = vsel %vm2168, %v2160, %v1881
  %v2178 = vsel %vm2168, %v2161, %v1883
  %v2179 = vsel %vm2168, %v2162, %v1885
  %v2180 = vsel %vm2168, %v2163, %v1887
  %v2181 = vsel %vm2168, %v2164, %v1889
  %v2182 = vsel %vm2168, %v2165, %v1891
  %v2183 = vsel %vm2168, %v2166, %v1893
  %v2184 = vsel %vm2168, %v2167, %v1895
  %vm2185 = vcmask 392192
  %v2186 = vsel %vm2185, %v2169, %v1929
  %v2187 = vsel %vm2185, %v2170, %v1931
  %v2188 = vsel %vm2185, %v2171, %v1933
  %v2189 = vsel %vm2185, %v2172, %v1935
  %v2190 = vsel %vm2185, %v2173, %v1937
  %v2191 = vsel %vm2185, %v2174, %v1939
  %v2192 = vsel %vm2185, %v2175, %v1941
  %v2193 = vsel %vm2185, %v2176, %v1943
  %v2194 = vsel %vm2185, %v2177, %v1945
  %v2195 = vsel %vm2185, %v2178, %v1947
  %v2196 = vsel %vm2185, %v2179, %v1949
  %v2197 = vsel %vm2185, %v2180, %v1951
  %v2198 = vsel %vm2185, %v2181, %v1953
  %v2199 = vsel %vm2185, %v2182, %v1955
  %v2200 = vsel %vm2185, %v2183, %v1957
  %v2201 = vsel %vm2185, %v2184, %v1959
  %vm2202 = vcmask 457728
  %v2203 = vsel %vm2202, %v2186, %v1993
  %v2204 = vsel %vm2202, %v2187, %v1995
  %v2205 = vsel %vm2202, %v2188, %v1997
  %v2206 = vsel %vm2202, %v2189, %v1999
  %v2207 = vsel %vm2202, %v2190, %v2001
  %v2208 = vsel %vm2202, %v2191, %v2003
  %v2209 = vsel %vm2202, %v2192, %v2005
  %v2210 = vsel %vm2202, %v2193, %v2007
  %v2211 = vsel %vm2202, %v2194, %v2009
  %v2212 = vsel %vm2202, %v2195, %v2011
  %v2213 = vsel %vm2202, %v2196, %v2013
  %v2214 = vsel %vm2202, %v2197, %v2015
  %v2215 = vsel %vm2202, %v2198, %v2017
  %v2216 = vsel %vm2202, %v2199, %v2019
  %v2217 = vsel %vm2202, %v2200, %v2021
  %v2218 = vsel %vm2202, %v2201, %v2023
  %vm2219 = vcmask 523264
  %v2220 = vsel %vm2219, %v2203, %v2057
  %v2221 = vsel %vm2219, %v2204, %v2059
  %v2222 = vsel %vm2219, %v2205, %v2061
  %v2223 = vsel %vm2219, %v2206, %v2063
  %v2224 = vsel %vm2219, %v2207, %v2065
  %v2225 = vsel %vm2219, %v2208, %v2067
  %v2226 = vsel %vm2219, %v2209, %v2069
  %v2227 = vsel %vm2219, %v2210, %v2071
  %v2228 = vsel %vm2219, %v2211, %v2073
  %v2229 = vsel %vm2219, %v2212, %v2075
  %v2230 = vsel %vm2219, %v2213, %v2077
  %v2231 = vsel %vm2219, %v2214, %v2079
  %v2232 = vsel %vm2219, %v2215, %v2081
  %v2233 = vsel %vm2219, %v2216, %v2083
  %v2234 = vsel %vm2219, %v2217, %v2085
  %v2235 = vsel %vm2219, %v2218, %v2087
  %v2236 = vld [vmem:[%s5] sm:$0xff]
  %v2237 = vld [vmem:[%s5 + $0x8] sm:$0xff]
  %v2238 = vld [vmem:[%s5 + $0x10] sm:$0xff]
  %v2239 = vld [vmem:[%s5 + $0x18] sm:$0xff]
  %v2240 = vld [vmem:[%s5 + $0x20] sm:$0xff]
  %v2241 = vld [vmem:[%s5 + $0x28] sm:$0xff]
  %v2242 = vld [vmem:[%s5 + $0x30] sm:$0xff]
  %v2243 = vld [vmem:[%s5 + $0x38] sm:$0xff]
  %v2244 = vld [vmem:[%s5 + $0x40] sm:$0xff]
  %vm2245 = vcmask 588800
  %v2247 = vsel %vm2245, %v2220, 0
  %v2250 = vsel %vm2245, %v2221, 0
  %v2253 = vsel %vm2245, %v2222, 0
  %v2256 = vsel %vm2245, %v2223, 0
  %v2259 = vsel %vm2245, %v2224, 0
  %v2262 = vsel %vm2245, %v2225, 0
  %v2265 = vsel %vm2245, %v2226, 0
  %v2268 = vsel %vm2245, %v2227, 0
  %v2271 = vsel %vm2245, %v2228, 0
  %v2274 = vsel %vm2245, %v2229, 0
  %v2277 = vsel %vm2245, %v2230, 0
  %v2280 = vsel %vm2245, %v2231, 0
  %v2283 = vsel %vm2245, %v2232, 0
  %v2286 = vsel %vm2245, %v2233, 0
  %v2289 = vsel %vm2245, %v2234, 0
  %v2292 = vsel %vm2245, %v2235, 0
  %2294 = vmatpush.msra.mxu0 0.0
  %2295 = vmatpush.msra.mxu0 0.0
  %2296 = vmatpush.msra.mxu0 0.0
  %2297 = vmatpush.msra.mxu0 0.0
  %2298 = vmatpush.msra.mxu0 0.0
  %2299 = vmatpush.msra.mxu0 0.0
  %2300 = vmatpush.msra.mxu0 0.0
  %2301 = vmatpush.msra.mxu0 %v2244
  %2302 = vmatpush.msra.mxu0 %v2243
  %2303 = vmatpush.msra.mxu0 %v2242
  %2304 = vmatpush.msra.mxu0 %v2241
  %2305 = vmatpush.msra.mxu0 %v2240
  %2306 = vmatpush.msra.mxu0 %v2239
  %2307 = vmatpush.msra.mxu0 %v2238
  %2308 = vmatpush.msra.mxu0 %v2237
  %2309 = vmatpush.msra.mxu0 %v2236
  %2310 = vmatmul.f32.gmra.mxu0 %v2247
  %v2311 = vpop.f32.mrf.mxu0
  %v2312 = vadd.f32 0.0, %v2311
  %2313 = vmatmul.f32.gmra.mxu0 %v2250
  %v2314 = vpop.f32.mrf.mxu0
  %v2315 = vadd.f32 0.0, %v2314
  %2316 = vmatmul.f32.gmra.mxu0 %v2253
  %v2317 = vpop.f32.mrf.mxu0
  %v2318 = vadd.f32 0.0, %v2317
  %2319 = vmatmul.f32.gmra.mxu0 %v2256
  %v2320 = vpop.f32.mrf.mxu0
  %v2321 = vadd.f32 0.0, %v2320
  %2322 = vmatmul.f32.gmra.mxu0 %v2259
  %v2323 = vpop.f32.mrf.mxu0
  %v2324 = vadd.f32 0.0, %v2323
  %2325 = vmatmul.f32.gmra.mxu0 %v2262
  %v2326 = vpop.f32.mrf.mxu0
  %v2327 = vadd.f32 0.0, %v2326
  %2328 = vmatmul.f32.gmra.mxu0 %v2265
  %v2329 = vpop.f32.mrf.mxu0
  %v2330 = vadd.f32 0.0, %v2329
  %2331 = vmatmul.f32.gmra.mxu0 %v2268
  %v2332 = vpop.f32.mrf.mxu0
  %v2333 = vadd.f32 0.0, %v2332
  %2334 = vmatmul.f32.gmra.mxu0 %v2271
  %v2335 = vpop.f32.mrf.mxu0
  %v2336 = vadd.f32 0.0, %v2335
  %2337 = vmatmul.f32.gmra.mxu0 %v2274
  %v2338 = vpop.f32.mrf.mxu0
  %v2339 = vadd.f32 0.0, %v2338
  %2340 = vmatmul.f32.gmra.mxu0 %v2277
  %v2341 = vpop.f32.mrf.mxu0
  %v2342 = vadd.f32 0.0, %v2341
  %2343 = vmatmul.f32.gmra.mxu0 %v2280
  %v2344 = vpop.f32.mrf.mxu0
  %v2345 = vadd.f32 0.0, %v2344
  %2346 = vmatmul.f32.gmra.mxu0 %v2283
  %v2347 = vpop.f32.mrf.mxu0
  %v2348 = vadd.f32 0.0, %v2347
  %2349 = vmatmul.f32.gmra.mxu0 %v2286
  %v2350 = vpop.f32.mrf.mxu0
  %v2351 = vadd.f32 0.0, %v2350
  %2352 = vmatmul.f32.gmra.mxu0 %v2289
  %v2353 = vpop.f32.mrf.mxu0
  %v2354 = vadd.f32 0.0, %v2353
  %2355 = vmatmul.f32.gmra.mxu0 %v2292
  %v2356 = vpop.f32.mrf.mxu0
  %v2357 = vadd.f32 0.0, %v2356
  %2358 = vdwg.mxu0
  %v2359 = vsel %vm949, %v2312, 0.0
  %v2360 = vsel %vm949, %v2315, 0.0
  %v2361 = vadd.f32 %v2359, %v2360
  %v2362 = vsel %vm949, %v2318, 0.0
  %v2363 = vadd.f32 %v2361, %v2362
  %v2364 = vsel %vm949, %v2321, 0.0
  %v2365 = vadd.f32 %v2363, %v2364
  %v2366 = vsel %vm949, %v2324, 0.0
  %v2367 = vadd.f32 %v2365, %v2366
  %v2368 = vsel %vm949, %v2327, 0.0
  %v2369 = vadd.f32 %v2367, %v2368
  %v2370 = vsel %vm949, %v2330, 0.0
  %v2371 = vadd.f32 %v2369, %v2370
  %v2372 = vsel %vm949, %v2333, 0.0
  %v2373 = vadd.f32 %v2371, %v2372
  %v2374 = vsel %vm949, %v2336, 0.0
  %v2375 = vadd.f32 %v2373, %v2374
  %v2376 = vsel %vm949, %v2339, 0.0
  %v2377 = vadd.f32 %v2375, %v2376
  %v2378 = vsel %vm949, %v2342, 0.0
  %v2379 = vadd.f32 %v2377, %v2378
  %v2380 = vsel %vm949, %v2345, 0.0
  %v2381 = vadd.f32 %v2379, %v2380
  %v2382 = vsel %vm949, %v2348, 0.0
  %v2383 = vadd.f32 %v2381, %v2382
  %v2384 = vsel %vm949, %v2351, 0.0
  %v2385 = vadd.f32 %v2383, %v2384
  %v2386 = vsel %vm949, %v2354, 0.0
  %v2387 = vadd.f32 %v2385, %v2386
  %v2388 = vsel %vm949, %v2357, 0.0
  %v2389 = vadd.f32 %v2387, %v2388
  %v2390 = vrot.slane %v2389, 4
  %v2391 = vadd.f32 %v2389, %v2390
  %v2392 = vrot.slane %v2391, 2
  %v2393 = vadd.f32 %v2391, %v2392
  %v2394 = vrot.slane %v2393, 1
  %v2395 = vadd.f32 %v2393, %v2394
  %v2396 = vmul.f32 %v2395, %v1234
  %v2397 = vsub.f32 %v2312, %v2396
  %v2398 = vsub.f32 %v2315, %v2396
  %v2399 = vsub.f32 %v2318, %v2396
  %v2400 = vsub.f32 %v2321, %v2396
  %v2401 = vsub.f32 %v2324, %v2396
  %v2402 = vsub.f32 %v2327, %v2396
  %v2403 = vsub.f32 %v2330, %v2396
  %v2404 = vsub.f32 %v2333, %v2396
  %v2405 = vsub.f32 %v2336, %v2396
  %v2406 = vsub.f32 %v2339, %v2396
  %v2407 = vsub.f32 %v2342, %v2396
  %v2408 = vsub.f32 %v2345, %v2396
  %v2409 = vsub.f32 %v2348, %v2396
  %v2410 = vsub.f32 %v2351, %v2396
  %v2411 = vsub.f32 %v2354, %v2396
  %v2412 = vsub.f32 %v2357, %v2396
  %v2413 = vmul.f32 %v2397, %v2397
  %v2414 = vmul.f32 %v2398, %v2398
  %v2415 = vmul.f32 %v2399, %v2399
  %v2416 = vmul.f32 %v2400, %v2400
  %v2417 = vmul.f32 %v2401, %v2401
  %v2418 = vmul.f32 %v2402, %v2402
  %v2419 = vmul.f32 %v2403, %v2403
  %v2420 = vmul.f32 %v2404, %v2404
  %v2421 = vmul.f32 %v2405, %v2405
  %v2422 = vmul.f32 %v2406, %v2406
  %v2423 = vmul.f32 %v2407, %v2407
  %v2424 = vmul.f32 %v2408, %v2408
  %v2425 = vmul.f32 %v2409, %v2409
  %v2426 = vmul.f32 %v2410, %v2410
  %v2427 = vmul.f32 %v2411, %v2411
  %v2428 = vmul.f32 %v2412, %v2412
  %v2429 = vsel %vm949, %v2413, 0.0
  %v2430 = vsel %vm949, %v2414, 0.0
  %v2431 = vadd.f32 %v2429, %v2430
  %v2432 = vsel %vm949, %v2415, 0.0
  %v2433 = vadd.f32 %v2431, %v2432
  %v2434 = vsel %vm949, %v2416, 0.0
  %v2435 = vadd.f32 %v2433, %v2434
  %v2436 = vsel %vm949, %v2417, 0.0
  %v2437 = vadd.f32 %v2435, %v2436
  %v2438 = vsel %vm949, %v2418, 0.0
  %v2439 = vadd.f32 %v2437, %v2438
  %v2440 = vsel %vm949, %v2419, 0.0
  %v2441 = vadd.f32 %v2439, %v2440
  %v2442 = vsel %vm949, %v2420, 0.0
  %v2443 = vadd.f32 %v2441, %v2442
  %v2444 = vsel %vm949, %v2421, 0.0
  %v2445 = vadd.f32 %v2443, %v2444
  %v2446 = vsel %vm949, %v2422, 0.0
  %v2447 = vadd.f32 %v2445, %v2446
  %v2448 = vsel %vm949, %v2423, 0.0
  %v2449 = vadd.f32 %v2447, %v2448
  %v2450 = vsel %vm949, %v2424, 0.0
  %v2451 = vadd.f32 %v2449, %v2450
  %v2452 = vsel %vm949, %v2425, 0.0
  %v2453 = vadd.f32 %v2451, %v2452
  %v2454 = vsel %vm949, %v2426, 0.0
  %v2455 = vadd.f32 %v2453, %v2454
  %v2456 = vsel %vm949, %v2427, 0.0
  %v2457 = vadd.f32 %v2455, %v2456
  %v2458 = vsel %vm949, %v2428, 0.0
  %v2459 = vadd.f32 %v2457, %v2458
  %v2460 = vrot.slane %v2459, 4
  %v2461 = vadd.f32 %v2459, %v2460
  %v2462 = vrot.slane %v2461, 2
  %v2463 = vadd.f32 %v2461, %v2462
  %v2464 = vrot.slane %v2463, 1
  %v2465 = vadd.f32 %v2463, %v2464
  %v2466 = vmul.f32 %v2465, %v1234
  %v2467 = vld [vmem:[%s6] sm:$0x1]
  %v2468 = vadd.f32 %v2396, %v2467
  %v2469 = vld [vmem:[%s7] sm:$0x1]
  %v2470 = vadd.f32 %v2466, 1e-05
  %v2471 = vrsqrt.pop %v2470
  %v2472 = vmul.f32 %v2471, %v2470
  %v2473 = vmul.f32 %v2472, %v2471
  %v2474 = vmul.f32 0.5, %v2473
  %v2475 = vsub.f32 1.5, %v2474
  %v2476 = vmul.f32 %v2471, %v2475
  %vm2477 = vweird.f32 %v2470
  %vm2478 = vweird.f32 %v2471
  %vm2479 = vmor %vm2477, %vm2478
  %v2480 = vsel %vm2479, %v2471, %v2476
  %v2481 = vmul.f32 %v2469, %v2480
  %v2482 = vld [vmem:[%s8] sm:$0x1]
  %v2483 = vsub.f32 %v2467, %v2468
  %v2484 = vmul.f32 %v2483, %v2481
  %v2485 = vadd.f32 %v2482, %v2484
  %v2487 = vperm.slane %v2481, 0
  %v2489 = vmul.f32 %v2312, %v2487
  %v2490 = vmul.f32 %v2315, %v2487
  %v2491 = vmul.f32 %v2318, %v2487
  %v2492 = vmul.f32 %v2321, %v2487
  %v2493 = vmul.f32 %v2324, %v2487
  %v2494 = vmul.f32 %v2327, %v2487
  %v2495 = vmul.f32 %v2330, %v2487
  %v2496 = vmul.f32 %v2333, %v2487
  %v2497 = vmul.f32 %v2336, %v2487
  %v2498 = vmul.f32 %v2339, %v2487
  %v2499 = vmul.f32 %v2342, %v2487
  %v2500 = vmul.f32 %v2345, %v2487
  %v2501 = vmul.f32 %v2348, %v2487
  %v2502 = vmul.f32 %v2351, %v2487
  %v2503 = vmul.f32 %v2354, %v2487
  %v2504 = vmul.f32 %v2357, %v2487
  %v2506 = vperm.slane %v2485, 0
  %v2508 = vadd.f32 %v2489, %v2506
  %v2509 = vadd.f32 %v2490, %v2506
  %v2510 = vadd.f32 %v2491, %v2506
  %v2511 = vadd.f32 %v2492, %v2506
  %v2512 = vadd.f32 %v2493, %v2506
  %v2513 = vadd.f32 %v2494, %v2506
  %v2514 = vadd.f32 %v2495, %v2506
  %v2515 = vadd.f32 %v2496, %v2506
  %v2516 = vadd.f32 %v2497, %v2506
  %v2517 = vadd.f32 %v2498, %v2506
  %v2518 = vadd.f32 %v2499, %v2506
  %v2519 = vadd.f32 %v2500, %v2506
  %v2520 = vadd.f32 %v2501, %v2506
  %v2521 = vadd.f32 %v2502, %v2506
  %v2522 = vadd.f32 %v2503, %v2506
  %v2523 = vadd.f32 %v2504, %v2506
  %v2524 = vmax.f32 %v2508, 0.0
  %v2525 = vmax.f32 %v2509, 0.0
  %v2526 = vmax.f32 %v2510, 0.0
  %v2527 = vmax.f32 %v2511, 0.0
  %v2528 = vmax.f32 %v2512, 0.0
  %v2529 = vmax.f32 %v2513, 0.0
  %v2530 = vmax.f32 %v2514, 0.0
  %v2531 = vmax.f32 %v2515, 0.0
  %v2532 = vmax.f32 %v2516, 0.0
  %v2533 = vmax.f32 %v2517, 0.0
  %v2534 = vmax.f32 %v2518, 0.0
  %v2535 = vmax.f32 %v2519, 0.0
  %v2536 = vmax.f32 %v2520, 0.0
  %v2537 = vmax.f32 %v2521, 0.0
  %v2538 = vmax.f32 %v2522, 0.0
  %v2539 = vmax.f32 %v2523, 0.0
  %2540 = vst.msk [vmem:[%s9] sm:$0xff] %vm949, %v2524
  %2541 = vst.msk [vmem:[%s9 + $0x8] sm:$0xff] %vm949, %v2525
  %2542 = vst.msk [vmem:[%s9 + $0x10] sm:$0xff] %vm949, %v2526
  %2543 = vst.msk [vmem:[%s9 + $0x18] sm:$0xff] %vm949, %v2527
  %2544 = vst.msk [vmem:[%s9 + $0x20] sm:$0xff] %vm949, %v2528
  %2545 = vst.msk [vmem:[%s9 + $0x28] sm:$0xff] %vm949, %v2529
  %2546 = vst.msk [vmem:[%s9 + $0x30] sm:$0xff] %vm949, %v2530
  %2547 = vst.msk [vmem:[%s9 + $0x38] sm:$0xff] %vm949, %v2531
  %2548 = vst.msk [vmem:[%s9 + $0x40] sm:$0xff] %vm949, %v2532
  %2549 = vst.msk [vmem:[%s9 + $0x48] sm:$0xff] %vm949, %v2533
  %2550 = vst.msk [vmem:[%s9 + $0x50] sm:$0xff] %vm949, %v2534
  %2551 = vst.msk [vmem:[%s9 + $0x58] sm:$0xff] %vm949, %v2535
  %2552 = vst.msk [vmem:[%s9 + $0x60] sm:$0xff] %vm949, %v2536
  %2553 = vst.msk [vmem:[%s9 + $0x68] sm:$0xff] %vm949, %v2537
  %2554 = vst.msk [vmem:[%s9 + $0x70] sm:$0xff] %vm949, %v2538
  %2555 = vst.msk [vmem:[%s9 + $0x78] sm:$0xff] %vm949, %v2539
  // Predicated region
  $region38: #{down_forward.1} parent=0 // pred_check
    _
  $region39: #{down_forward.1} parent=0 // pred_check_branch
    %2557 = sbr.rel (0) target = $region41
  $region40: #{down_forward.1} parent=0 // pred_region
    _
  $region41: #{down_forward.1} parent=0 // pred_fallthru
    _
  // Predicated region
  $region42: #{down_forward.1} parent=0 // pred_check
    _
  $region43: #{down_forward.1} parent=0 // pred_check_branch
    %2559 = sbr.rel (0) target = $region45
  $region44: #{down_forward.1} parent=0 // pred_region
    _
  $region45: #{down_forward.1} parent=0 // pred_fallthru
    _

</llo_original>
